<compile_context>
chip_gen: v7x
topology: tpu7x:2x2x1
jax: 0.10.0
libtpu: 0.0.40
codegen_flags: <defaults>
</compile_context>

<pallas_src>
import jax
import jax.numpy as jnp
import numpy as np
from jax.experimental import pallas as pl
from jax.experimental.pallas import tpu as pltpu


def _round_up(n, m):
    return ((n + m - 1) // m) * m


def _pad2d(a, rows, cols, dtype):
    out = jnp.zeros((rows, cols), dtype)
    return out.at[:a.shape[0], :a.shape[1]].set(a.astype(dtype))


# ---------------------------------------------------------------------------
# Fused Pallas kernel: conv1 + ReLU + conv2 + pair gather + bilinear score
# ---------------------------------------------------------------------------
def _fused_gnn_kernel(xg_ref, xp_ref, a_pg_ref, a_gp_ref,
                      invg_ref, invp_ref, pg_ref, pp_ref,
                      w1gr_ref, w1gl_ref, b1g_ref,
                      w1pr_ref, w1pl_ref, b1p_ref,
                      w2gr_ref, w2gl_ref, b2g_ref,
                      w2pr_ref, w2pl_ref, b2p_ref,
                      wb_ref, bb_ref, out_ref):
    bf16, f32 = jnp.bfloat16, jnp.float32

    xg = xg_ref[...]          # (Ng, Fg)  bf16, padded
    xp = xp_ref[...]          # (Np, Fp)  bf16, padded
    a_pg = a_pg_ref[...]      # (Ng, Np)  bf16 exact edge counts (dst=gene)
    a_gp = a_gp_ref[...]      # (Np, Ng)  bf16 exact edge counts (dst=panel)
    inv_g = invg_ref[...]     # (Ng, 1)   f32  1/deg (0 for zero-degree rows)
    inv_p = invp_ref[...]     # (Np, 1)   f32

    def sage(x_dst_b, agg_b, wr_ref, wl_ref, b_ref):
        # x_dst @ W_r^T + mean_agg(x_src) @ W_l^T + b_l, f32 accumulation.
        return (jnp.dot(x_dst_b, wr_ref[...], preferred_element_type=f32)
                + jnp.dot(agg_b, wl_ref[...], preferred_element_type=f32)
                + b_ref[...])

    # ----- layer 1: counts-adjacency matmul, then f32 inv-degree row scale
    agg_g1 = (jnp.dot(a_pg, xp, preferred_element_type=f32) * inv_g).astype(bf16)
    agg_p1 = (jnp.dot(a_gp, xg, preferred_element_type=f32) * inv_p).astype(bf16)
    gene1 = jnp.maximum(sage(xg, agg_g1, w1gr_ref, w1gl_ref, b1g_ref), 0.0).astype(bf16)
    panel1 = jnp.maximum(sage(xp, agg_p1, w1pr_ref, w1pl_ref, b1p_ref), 0.0).astype(bf16)

    # ----- layer 2 (no activation)
    agg_g2 = (jnp.dot(a_pg, panel1, preferred_element_type=f32) * inv_g).astype(bf16)
    agg_p2 = (jnp.dot(a_gp, gene1, preferred_element_type=f32) * inv_p).astype(bf16)
    gene2 = sage(gene1, agg_g2, w2gr_ref, w2gl_ref, b2g_ref).astype(bf16)    # (Ng, H)
    panel2 = sage(panel1, agg_p2, w2pr_ref, w2pl_ref, b2p_ref).astype(bf16)  # (Np, H)

    # ----- scorer: gather FIRST (bf16 one-hot matmul gather), then bilinear
    n_g = xg.shape[0]
    n_p = xp.shape[0]
    p_pad = pg_ref.shape[0]
    oh_g = (jax.lax.broadcasted_iota(jnp.int32, (p_pad, n_g), 1)
            == pg_ref[...]).astype(bf16)                                     # (P, Ng)
    oh_p = (jax.lax.broadcasted_iota(jnp.int32, (p_pad, n_p), 1)
            == pp_ref[...]).astype(bf16)                                     # (P, Np)
    g_sel = jnp.dot(oh_g, gene2, preferred_element_type=f32)                 # (P, H)
    p_sel = jnp.dot(oh_p, panel2, preferred_element_type=f32)                # (P, H)
    t = jnp.dot(g_sel.astype(bf16), wb_ref[...], preferred_element_type=f32)  # (P, H)
    out_ref[...] = jnp.sum(t * p_sel, axis=-1, keepdims=True) + bb_ref[...]  # (P, 1)


# ---------------------------------------------------------------------------
# One-time preparation (cacheable per graph / per parameter set)
# ---------------------------------------------------------------------------
def prepare_graph(edge_index_dict, n_gene, n_panel):
    """Dense per-relation edge-count adjacency (bf16, exact) + f32 inverse degrees.

    Node counts are padded to multiples of 16 (bf16 sublane packing); padded
    rows/cols carry no edges, so they never influence valid nodes.
    """
    ng_pad = _round_up(n_gene, 16)
    np_pad = _round_up(n_panel, 16)

    def adj(edge_index, n_src_pad, n_dst_pad):
        src, dst = edge_index[0], edge_index[1]
        a = jnp.zeros((n_dst_pad, n_src_pad), jnp.float32).at[dst, src].add(1.0)
        deg = jnp.sum(a, axis=1, keepdims=True)
        inv = jnp.where(deg > 0, 1.0 / deg, 0.0)
        return a.astype(jnp.bfloat16), inv   # small integer counts: exact in bf16

    a_pg, inv_g = adj(edge_index_dict[('panel', 'rev_in', 'gene')], np_pad, ng_pad)  # (Ng, Np)
    a_gp, inv_p = adj(edge_index_dict[('gene', 'in', 'panel')], ng_pad, np_pad)      # (Np, Ng)
    return {'a_pg': a_pg, 'a_gp': a_gp, 'inv_g': inv_g, 'inv_p': inv_p}


def prepare_params(params):
    """Pre-transpose + zero-pad SAGE/Bilinear weights to MXU-friendly shapes (done once)."""
    bf16, f32 = jnp.bfloat16, jnp.float32
    wl1_gp, b1_gp, wr1_gp = params['l1_gp']   # relation gene->panel (dst = panel)
    wl1_pg, b1_pg, wr1_pg = params['l1_pg']   # relation panel->gene (dst = gene)
    wl2_gp, b2_gp, wr2_gp = params['l2_gp']
    wl2_pg, b2_pg, wr2_pg = params['l2_pg']

    hidden = wl1_gp.shape[0]
    f_gene = wl1_gp.shape[1]
    f_panel = wl1_pg.shape[1]
    hp = _round_up(hidden, 128)
    fgp = _round_up(f_gene, 128)
    fpp = _round_up(f_panel, 128)

    def wt(w, rows, cols):                    # torch (out,in) -> padded W^T (in_pad, out_pad) bf16
        return _pad2d(w.T, rows, cols, bf16)

    def bias(b, cols):
        return _pad2d(b.reshape(1, -1), 1, cols, f32)

    return {
        # gene dst rows: self term W_r_pg, aggregated-panel term W_l_pg, bias b_pg
        'w1_gene_r': wt(wr1_pg, fgp, hp), 'w1_gene_l': wt(wl1_pg, fpp, hp), 'b1_gene': bias(b1_pg, hp),
        # panel dst rows: self term W_r_gp, aggregated-gene term W_l_gp, bias b_gp
        'w1_panel_r': wt(wr1_gp, fpp, hp), 'w1_panel_l': wt(wl1_gp, fgp, hp), 'b1_panel': bias(b1_gp, hp),
        'w2_gene_r': wt(wr2_pg, hp, hp), 'w2_gene_l': wt(wl2_pg, hp, hp), 'b2_gene': bias(b2_pg, hp),
        'w2_panel_r': wt(wr2_gp, hp, hp), 'w2_panel_l': wt(wl2_gp, hp, hp), 'b2_panel': bias(b2_gp, hp),
        'w_bil': _pad2d(params['bilinear_w'], hp, hp, bf16),
        'b_bil': params['bilinear_b'].reshape(1, 1).astype(f32),
    }


# ---------------------------------------------------------------------------
# Forward pass: one fused pallas_call
# ---------------------------------------------------------------------------
def gene_panel_gnn_forward(prep, graph, x_dict, pairs):
    x_gene, x_panel = x_dict['gene'], x_dict['panel']
    ng_pad, np_pad = graph['a_pg'].shape
    fg_pad = prep['w1_gene_r'].shape[0]
    fp_pad = prep['w1_gene_l'].shape[0]
    n_pairs = pairs.shape[1]
    p_pad = _round_up(n_pairs, 8)

    xg = _pad2d(x_gene, ng_pad, fg_pad, jnp.bfloat16)
    xp = _pad2d(x_panel, np_pad, fp_pad, jnp.bfloat16)
    # Padded pair slots reuse index 0; their scores are computed and sliced off.
    pair_g = jnp.zeros((p_pad, 1), jnp.int32).at[:n_pairs, 0].set(pairs[0].astype(jnp.int32))
    pair_p = jnp.zeros((p_pad, 1), jnp.int32).at[:n_pairs, 0].set(pairs[1].astype(jnp.int32))

    n_inputs = 22
    out = pl.pallas_call(
        _fused_gnn_kernel,
        out_shape=jax.ShapeDtypeStruct((p_pad, 1), jnp.float32),
        in_specs=[pl.BlockSpec(memory_space=pltpu.MemorySpace.VMEM) for _ in range(n_inputs)],
        out_specs=pl.BlockSpec(memory_space=pltpu.MemorySpace.VMEM),
        compiler_params=pltpu.CompilerParams(
            # v5e's default scoped VMEM is only 16 MiB; claim more headroom while
            # staying under v7x's 64 MiB physical VMEM.
            vmem_limit_bytes=48 * 1024 * 1024),
    )(xg, xp, graph['a_pg'], graph['a_gp'], graph['inv_g'], graph['inv_p'],
      pair_g, pair_p,
      prep['w1_gene_r'], prep['w1_gene_l'], prep['b1_gene'],
      prep['w1_panel_r'], prep['w1_panel_l'], prep['b1_panel'],
      prep['w2_gene_r'], prep['w2_gene_l'], prep['b2_gene'],
      prep['w2_panel_r'], prep['w2_panel_l'], prep['b2_panel'],
      prep['w_bil'], prep['b_bil'])

    return out[:n_pairs, 0]


# ---------------------------------------------------------------------------
# Pure-JAX f32 reference (mirrors the PyTorch module) + param init
# ---------------------------------------------------------------------------
def _build_norm_adj(edge_index, n_src, n_dst):
    src, dst = edge_index[0], edge_index[1]
    a = jnp.zeros((n_dst, n_src), jnp.float32).at[dst, src].add(1.0)
    deg = jnp.sum(a, axis=1, keepdims=True)
    return a / jnp.maximum(deg, 1.0)


def reference_forward(params, x_dict, edge_index_dict, pairs):
    xg, xp = x_dict['gene'], x_dict['panel']
    a_gp = _build_norm_adj(edge_index_dict[('gene', 'in', 'panel')], xg.shape[0], xp.shape[0])
    a_pg = _build_norm_adj(edge_index_dict[('panel', 'rev_in', 'gene')], xp.shape[0], xg.shape[0])

    def sage(a, xs, xd, w_l, b_l, w_r):
        return (a @ xs) @ w_l.T + xd @ w_r.T + b_l

    p1 = jax.nn.relu(sage(a_gp, xg, xp, *params['l1_gp']))
    g1 = jax.nn.relu(sage(a_pg, xp, xg, *params['l1_pg']))
    p2 = sage(a_gp, g1, p1, *params['l2_gp'])
    g2 = sage(a_pg, p1, g1, *params['l2_pg'])
    ge = g2[pairs[0]]
    pe = p2[pairs[1]]
    return jnp.sum((ge @ params['bilinear_w']) * pe, axis=-1) + params['bilinear_b'][0]


def init_params(key, f_gene, f_panel, hidden):
    ks = jax.random.split(key, 12)

    def lin(k, out_dim, in_dim):
        return jax.random.normal(k, (out_dim, in_dim), jnp.float32) * 0.1

    return {
        # (W_l [H, F_src], b_l [H], W_r [H, F_dst])  -- torch layout
        'l1_gp': (lin(ks[0], hidden, f_gene),
                  jax.random.normal(ks[1], (hidden,), jnp.float32) * 0.01,
                  lin(ks[2], hidden, f_panel)),
        'l1_pg': (lin(ks[3], hidden, f_panel),
                  jax.random.normal(ks[4], (hidden,), jnp.float32) * 0.01,
                  lin(ks[5], hidden, f_gene)),
        'l2_gp': (lin(ks[6], hidden, hidden),
                  jnp.zeros((hidden,), jnp.float32),
                  lin(ks[7], hidden, hidden)),
        'l2_pg': (lin(ks[8], hidden, hidden),
                  jnp.zeros((hidden,), jnp.float32),
                  lin(ks[9], hidden, hidden)),
        # torch.nn.Bilinear(H, H, 1): weight (1, H, H) -> store the (H, H) slab
        'bilinear_w': lin(ks[10], hidden, hidden),
        'bilinear_b': jax.random.normal(ks[11], (1,), jnp.float32) * 0.01,
    }


if __name__ == "__main__":
    key = jax.random.PRNGKey(0)
    hidden = 32
    n_gene, n_panel = 16, 8
    f_gene, f_panel = 12, 6
    n_edges, n_pairs = 32, 8

    k = jax.random.split(key, 8)
    x_gene = jax.random.normal(k[0], (n_gene, f_gene), jnp.float32)
    x_panel = jax.random.normal(k[1], (n_panel, f_panel), jnp.float32)

    src = jax.random.randint(k[2], (n_edges,), 0, n_gene)
    dst = jax.random.randint(k[3], (n_edges,), 0, n_panel)
    edge_index_dict = {
        ('gene', 'in', 'panel'): jnp.stack([src, dst]),
        ('panel', 'rev_in', 'gene'): jnp.stack([dst, src]),  # reverse relation
    }

    pairs = jnp.stack([
        jax.random.randint(k[4], (n_pairs,), 0, n_gene),
        jax.random.randint(k[5], (n_pairs,), 0, n_panel),
    ])

    params = init_params(k[6], f_gene, f_panel, hidden)
    x_dict = {'gene': x_gene, 'panel': x_panel}

    # One-time preparation (cached across forwards for a fixed graph / params).
    prep = prepare_params(params)
    graph = prepare_graph(edge_index_dict, n_gene, n_panel)

    fwd = jax.jit(gene_panel_gnn_forward)
    out = fwd(prep, graph, x_dict, pairs)
    jax.block_until_ready(out)

    assert out.shape == (n_pairs,), out.shape
    assert out.dtype == jnp.float32

    # Correctness vs. pure-JAX f32 reference (bf16 MXU matmuls with f32 acc in
    # the kernel; adjacency counts and one-hot gathers are exact).
    ref = reference_forward(params, x_dict, edge_index_dict, pairs)
    np.testing.assert_allclose(np.asarray(out), np.asarray(ref), rtol=0.1, atol=0.1)

    print("KERNEL_OK")
</pallas_src>

<mosaic_0001>
module attributes {stable_mosaic.version = 11 : i64} {
  func.func @_fused_gnn_kernel(%arg0: memref<16x128xbf16, #tpu.memory_space<vmem>>, %arg1: memref<16x128xbf16, #tpu.memory_space<vmem>>, %arg2: memref<16x16xbf16, #tpu.memory_space<vmem>>, %arg3: memref<16x16xbf16, #tpu.memory_space<vmem>>, %arg4: memref<16x1xf32, #tpu.memory_space<vmem>>, %arg5: memref<16x1xf32, #tpu.memory_space<vmem>>, %arg6: memref<8x1xi32, #tpu.memory_space<vmem>>, %arg7: memref<8x1xi32, #tpu.memory_space<vmem>>, %arg8: memref<128x128xbf16, #tpu.memory_space<vmem>>, %arg9: memref<128x128xbf16, #tpu.memory_space<vmem>>, %arg10: memref<1x128xf32, #tpu.memory_space<vmem>>, %arg11: memref<128x128xbf16, #tpu.memory_space<vmem>>, %arg12: memref<128x128xbf16, #tpu.memory_space<vmem>>, %arg13: memref<1x128xf32, #tpu.memory_space<vmem>>, %arg14: memref<128x128xbf16, #tpu.memory_space<vmem>>, %arg15: memref<128x128xbf16, #tpu.memory_space<vmem>>, %arg16: memref<1x128xf32, #tpu.memory_space<vmem>>, %arg17: memref<128x128xbf16, #tpu.memory_space<vmem>>, %arg18: memref<128x128xbf16, #tpu.memory_space<vmem>>, %arg19: memref<1x128xf32, #tpu.memory_space<vmem>>, %arg20: memref<128x128xbf16, #tpu.memory_space<vmem>>, %arg21: memref<1x1xf32, #tpu.memory_space<vmem>>, %arg22: memref<8x1xf32, #tpu.memory_space<vmem>>) attributes {dimension_semantics = [], scalar_prefetch = 0 : i64, scratch_operands = 0 : i64, tpu.core_type = #tpu.core_type<tc>} {
    %c0 = arith.constant 0 : index
    %c0_0 = arith.constant 0 : index
    %0 = vector.load %arg0[%c0, %c0_0] : memref<16x128xbf16, #tpu.memory_space<vmem>>, vector<16x128xbf16>
    %c0_1 = arith.constant 0 : index
    %c0_2 = arith.constant 0 : index
    %1 = vector.load %arg1[%c0_1, %c0_2] : memref<16x128xbf16, #tpu.memory_space<vmem>>, vector<16x128xbf16>
    %c0_3 = arith.constant 0 : index
    %c0_4 = arith.constant 0 : index
    %2 = vector.load %arg2[%c0_3, %c0_4] : memref<16x16xbf16, #tpu.memory_space<vmem>>, vector<16x16xbf16>
    %c0_5 = arith.constant 0 : index
    %c0_6 = arith.constant 0 : index
    %3 = vector.load %arg3[%c0_5, %c0_6] : memref<16x16xbf16, #tpu.memory_space<vmem>>, vector<16x16xbf16>
    %c0_7 = arith.constant 0 : index
    %c0_8 = arith.constant 0 : index
    %4 = vector.load %arg4[%c0_7, %c0_8] : memref<16x1xf32, #tpu.memory_space<vmem>>, vector<16x1xf32>
    %c0_9 = arith.constant 0 : index
    %c0_10 = arith.constant 0 : index
    %5 = vector.load %arg5[%c0_9, %c0_10] : memref<16x1xf32, #tpu.memory_space<vmem>>, vector<16x1xf32>
    %cst = arith.constant dense<0.000000e+00> : vector<16x128xf32>
    %6 = tpu.matmul %2, %1, %cst {dimension_numbers = #tpu.dot_dimension_numbers<[1], [0], [0], [1], [0, 0, 1, 1], [], []>} : vector<16x16xbf16>, vector<16x128xbf16>, vector<16x128xf32> -> vector<16x128xf32>
    %7 = vector.broadcast %4 : vector<16x1xf32> to vector<16x128xf32>
    %8 = arith.mulf %6, %7 : vector<16x128xf32>
    %9 = arith.truncf %8 : vector<16x128xf32> to vector<16x128xbf16>
    %cst_11 = arith.constant dense<0.000000e+00> : vector<16x128xf32>
    %10 = tpu.matmul %3, %0, %cst_11 {dimension_numbers = #tpu.dot_dimension_numbers<[1], [0], [0], [1], [0, 0, 1, 1], [], []>} : vector<16x16xbf16>, vector<16x128xbf16>, vector<16x128xf32> -> vector<16x128xf32>
    %11 = vector.broadcast %5 : vector<16x1xf32> to vector<16x128xf32>
    %12 = arith.mulf %10, %11 : vector<16x128xf32>
    %13 = arith.truncf %12 : vector<16x128xf32> to vector<16x128xbf16>
    %c0_12 = arith.constant 0 : index
    %c0_13 = arith.constant 0 : index
    %14 = vector.load %arg8[%c0_12, %c0_13] : memref<128x128xbf16, #tpu.memory_space<vmem>>, vector<128x128xbf16>
    %cst_14 = arith.constant dense<0.000000e+00> : vector<16x128xf32>
    %15 = tpu.matmul %0, %14, %cst_14 {dimension_numbers = #tpu.dot_dimension_numbers<[1], [0], [0], [1], [0, 0, 1, 1], [], []>} : vector<16x128xbf16>, vector<128x128xbf16>, vector<16x128xf32> -> vector<16x128xf32>
    %c0_15 = arith.constant 0 : index
    %c0_16 = arith.constant 0 : index
    %16 = vector.load %arg9[%c0_15, %c0_16] : memref<128x128xbf16, #tpu.memory_space<vmem>>, vector<128x128xbf16>
    %cst_17 = arith.constant dense<0.000000e+00> : vector<16x128xf32>
    %17 = tpu.matmul %9, %16, %cst_17 {dimension_numbers = #tpu.dot_dimension_numbers<[1], [0], [0], [1], [0, 0, 1, 1], [], []>} : vector<16x128xbf16>, vector<128x128xbf16>, vector<16x128xf32> -> vector<16x128xf32>
    %18 = arith.addf %15, %17 : vector<16x128xf32>
    %c0_18 = arith.constant 0 : index
    %c0_19 = arith.constant 0 : index
    %19 = vector.load %arg10[%c0_18, %c0_19] : memref<1x128xf32, #tpu.memory_space<vmem>>, vector<1x128xf32>
    %20 = vector.broadcast %19 : vector<1x128xf32> to vector<16x128xf32>
    %21 = arith.addf %18, %20 : vector<16x128xf32>
    %cst_20 = arith.constant 0.000000e+00 : f32
    %22 = vector.broadcast %cst_20 : f32 to vector<16x128xf32>
    %23 = arith.maximumf %21, %22 : vector<16x128xf32>
    %24 = arith.truncf %23 : vector<16x128xf32> to vector<16x128xbf16>
    %c0_21 = arith.constant 0 : index
    %c0_22 = arith.constant 0 : index
    %25 = vector.load %arg11[%c0_21, %c0_22] : memref<128x128xbf16, #tpu.memory_space<vmem>>, vector<128x128xbf16>
    %cst_23 = arith.constant dense<0.000000e+00> : vector<16x128xf32>
    %26 = tpu.matmul %1, %25, %cst_23 {dimension_numbers = #tpu.dot_dimension_numbers<[1], [0], [0], [1], [0, 0, 1, 1], [], []>} : vector<16x128xbf16>, vector<128x128xbf16>, vector<16x128xf32> -> vector<16x128xf32>
    %c0_24 = arith.constant 0 : index
    %c0_25 = arith.constant 0 : index
    %27 = vector.load %arg12[%c0_24, %c0_25] : memref<128x128xbf16, #tpu.memory_space<vmem>>, vector<128x128xbf16>
    %cst_26 = arith.constant dense<0.000000e+00> : vector<16x128xf32>
    %28 = tpu.matmul %13, %27, %cst_26 {dimension_numbers = #tpu.dot_dimension_numbers<[1], [0], [0], [1], [0, 0, 1, 1], [], []>} : vector<16x128xbf16>, vector<128x128xbf16>, vector<16x128xf32> -> vector<16x128xf32>
    %29 = arith.addf %26, %28 : vector<16x128xf32>
    %c0_27 = arith.constant 0 : index
    %c0_28 = arith.constant 0 : index
    %30 = vector.load %arg13[%c0_27, %c0_28] : memref<1x128xf32, #tpu.memory_space<vmem>>, vector<1x128xf32>
    %31 = vector.broadcast %30 : vector<1x128xf32> to vector<16x128xf32>
    %32 = arith.addf %29, %31 : vector<16x128xf32>
    %cst_29 = arith.constant 0.000000e+00 : f32
    %33 = vector.broadcast %cst_29 : f32 to vector<16x128xf32>
    %34 = arith.maximumf %32, %33 : vector<16x128xf32>
    %35 = arith.truncf %34 : vector<16x128xf32> to vector<16x128xbf16>
    %cst_30 = arith.constant dense<0.000000e+00> : vector<16x128xf32>
    %36 = tpu.matmul %2, %35, %cst_30 {dimension_numbers = #tpu.dot_dimension_numbers<[1], [0], [0], [1], [0, 0, 1, 1], [], []>} : vector<16x16xbf16>, vector<16x128xbf16>, vector<16x128xf32> -> vector<16x128xf32>
    %37 = vector.broadcast %4 : vector<16x1xf32> to vector<16x128xf32>
    %38 = arith.mulf %36, %37 : vector<16x128xf32>
    %39 = arith.truncf %38 : vector<16x128xf32> to vector<16x128xbf16>
    %cst_31 = arith.constant dense<0.000000e+00> : vector<16x128xf32>
    %40 = tpu.matmul %3, %24, %cst_31 {dimension_numbers = #tpu.dot_dimension_numbers<[1], [0], [0], [1], [0, 0, 1, 1], [], []>} : vector<16x16xbf16>, vector<16x128xbf16>, vector<16x128xf32> -> vector<16x128xf32>
    %41 = vector.broadcast %5 : vector<16x1xf32> to vector<16x128xf32>
    %42 = arith.mulf %40, %41 : vector<16x128xf32>
    %43 = arith.truncf %42 : vector<16x128xf32> to vector<16x128xbf16>
    %c0_32 = arith.constant 0 : index
    %c0_33 = arith.constant 0 : index
    %44 = vector.load %arg14[%c0_32, %c0_33] : memref<128x128xbf16, #tpu.memory_space<vmem>>, vector<128x128xbf16>
    %cst_34 = arith.constant dense<0.000000e+00> : vector<16x128xf32>
    %45 = tpu.matmul %24, %44, %cst_34 {dimension_numbers = #tpu.dot_dimension_numbers<[1], [0], [0], [1], [0, 0, 1, 1], [], []>} : vector<16x128xbf16>, vector<128x128xbf16>, vector<16x128xf32> -> vector<16x128xf32>
    %c0_35 = arith.constant 0 : index
    %c0_36 = arith.constant 0 : index
    %46 = vector.load %arg15[%c0_35, %c0_36] : memref<128x128xbf16, #tpu.memory_space<vmem>>, vector<128x128xbf16>
    %cst_37 = arith.constant dense<0.000000e+00> : vector<16x128xf32>
    %47 = tpu.matmul %39, %46, %cst_37 {dimension_numbers = #tpu.dot_dimension_numbers<[1], [0], [0], [1], [0, 0, 1, 1], [], []>} : vector<16x128xbf16>, vector<128x128xbf16>, vector<16x128xf32> -> vector<16x128xf32>
    %48 = arith.addf %45, %47 : vector<16x128xf32>
    %c0_38 = arith.constant 0 : index
    %c0_39 = arith.constant 0 : index
    %49 = vector.load %arg16[%c0_38, %c0_39] : memref<1x128xf32, #tpu.memory_space<vmem>>, vector<1x128xf32>
    %50 = vector.broadcast %49 : vector<1x128xf32> to vector<16x128xf32>
    %51 = arith.addf %48, %50 : vector<16x128xf32>
    %52 = arith.truncf %51 : vector<16x128xf32> to vector<16x128xbf16>
    %c0_40 = arith.constant 0 : index
    %c0_41 = arith.constant 0 : index
    %53 = vector.load %arg17[%c0_40, %c0_41] : memref<128x128xbf16, #tpu.memory_space<vmem>>, vector<128x128xbf16>
    %cst_42 = arith.constant dense<0.000000e+00> : vector<16x128xf32>
    %54 = tpu.matmul %35, %53, %cst_42 {dimension_numbers = #tpu.dot_dimension_numbers<[1], [0], [0], [1], [0, 0, 1, 1], [], []>} : vector<16x128xbf16>, vector<128x128xbf16>, vector<16x128xf32> -> vector<16x128xf32>
    %c0_43 = arith.constant 0 : index
    %c0_44 = arith.constant 0 : index
    %55 = vector.load %arg18[%c0_43, %c0_44] : memref<128x128xbf16, #tpu.memory_space<vmem>>, vector<128x128xbf16>
    %cst_45 = arith.constant dense<0.000000e+00> : vector<16x128xf32>
    %56 = tpu.matmul %43, %55, %cst_45 {dimension_numbers = #tpu.dot_dimension_numbers<[1], [0], [0], [1], [0, 0, 1, 1], [], []>} : vector<16x128xbf16>, vector<128x128xbf16>, vector<16x128xf32> -> vector<16x128xf32>
    %57 = arith.addf %54, %56 : vector<16x128xf32>
    %c0_46 = arith.constant 0 : index
    %c0_47 = arith.constant 0 : index
    %58 = vector.load %arg19[%c0_46, %c0_47] : memref<1x128xf32, #tpu.memory_space<vmem>>, vector<1x128xf32>
    %59 = vector.broadcast %58 : vector<1x128xf32> to vector<16x128xf32>
    %60 = arith.addf %57, %59 : vector<16x128xf32>
    %61 = arith.truncf %60 : vector<16x128xf32> to vector<16x128xbf16>
    %62 = tpu.iota {dimensions = array<i32: 1>} : vector<8x16xi32>
    %c0_48 = arith.constant 0 : index
    %c0_49 = arith.constant 0 : index
    %63 = vector.load %arg6[%c0_48, %c0_49] : memref<8x1xi32, #tpu.memory_space<vmem>>, vector<8x1xi32>
    %64 = vector.broadcast %63 : vector<8x1xi32> to vector<8x16xi32>
    %65 = arith.cmpi eq, %62, %64 : vector<8x16xi32>
    %66 = arith.extui %65 : vector<8x16xi1> to vector<8x16xi32>
    %67 = arith.sitofp %66 : vector<8x16xi32> to vector<8x16xf32>
    %68 = arith.truncf %67 : vector<8x16xf32> to vector<8x16xbf16>
    %69 = tpu.iota {dimensions = array<i32: 1>} : vector<8x16xi32>
    %c0_50 = arith.constant 0 : index
    %c0_51 = arith.constant 0 : index
    %70 = vector.load %arg7[%c0_50, %c0_51] : memref<8x1xi32, #tpu.memory_space<vmem>>, vector<8x1xi32>
    %71 = vector.broadcast %70 : vector<8x1xi32> to vector<8x16xi32>
    %72 = arith.cmpi eq, %69, %71 : vector<8x16xi32>
    %73 = arith.extui %72 : vector<8x16xi1> to vector<8x16xi32>
    %74 = arith.sitofp %73 : vector<8x16xi32> to vector<8x16xf32>
    %75 = arith.truncf %74 : vector<8x16xf32> to vector<8x16xbf16>
    %cst_52 = arith.constant dense<0.000000e+00> : vector<8x128xf32>
    %76 = tpu.matmul %68, %52, %cst_52 {dimension_numbers = #tpu.dot_dimension_numbers<[1], [0], [0], [1], [0, 0, 1, 1], [], []>} : vector<8x16xbf16>, vector<16x128xbf16>, vector<8x128xf32> -> vector<8x128xf32>
    %cst_53 = arith.constant dense<0.000000e+00> : vector<8x128xf32>
    %77 = tpu.matmul %75, %61, %cst_53 {dimension_numbers = #tpu.dot_dimension_numbers<[1], [0], [0], [1], [0, 0, 1, 1], [], []>} : vector<8x16xbf16>, vector<16x128xbf16>, vector<8x128xf32> -> vector<8x128xf32>
    %78 = arith.truncf %76 : vector<8x128xf32> to vector<8x128xbf16>
    %c0_54 = arith.constant 0 : index
    %c0_55 = arith.constant 0 : index
    %79 = vector.load %arg20[%c0_54, %c0_55] : memref<128x128xbf16, #tpu.memory_space<vmem>>, vector<128x128xbf16>
    %cst_56 = arith.constant dense<0.000000e+00> : vector<8x128xf32>
    %80 = tpu.matmul %78, %79, %cst_56 {dimension_numbers = #tpu.dot_dimension_numbers<[1], [0], [0], [1], [0, 0, 1, 1], [], []>} : vector<8x128xbf16>, vector<128x128xbf16>, vector<8x128xf32> -> vector<8x128xf32>
    %81 = arith.mulf %80, %77 : vector<8x128xf32>
    %cst_57 = arith.constant dense<0.000000e+00> : vector<8xf32>
    %82 = vector.multi_reduction <add>, %81, %cst_57 [1] : vector<8x128xf32> to vector<8xf32>
    %83 = vector.shape_cast %82 : vector<8xf32> to vector<8x1xf32>
    %c0_58 = arith.constant 0 : index
    %c0_59 = arith.constant 0 : index
    %84 = vector.load %arg21[%c0_58, %c0_59] : memref<1x1xf32, #tpu.memory_space<vmem>>, vector<1x1xf32>
    %85 = vector.broadcast %84 : vector<1x1xf32> to vector<8x1xf32>
    %86 = arith.addf %83, %85 : vector<8x1xf32>
    %c0_60 = arith.constant 0 : index
    %c0_61 = arith.constant 0 : index
    %87 = vector.load %arg22[%c0_60, %c0_61] : memref<8x1xf32, #tpu.memory_space<vmem>>, vector<8x1xf32>
    tpu.vector_store %arg22[%c0_60, %c0_61], %86 {strides = array<i32>} : memref<8x1xf32, #tpu.memory_space<vmem>>, vector<8x1xf32>,
    return
  }
}

</mosaic_0001>

<llo_original>
// kernel: gene_panel_gnn_forward.1
$region0: #{gene_panel_gnn_forward.1}
  #allocation0 [shape = 'u32[]', space=smem, size = 0x4, offset = 0x4, fixed_abs, tag = 'smem constant byte address 0x4 - core index']
  #allocation1 [shape = 'u32[144,128]{1,0:T(1,128)}', space=vmem, size = 0x12000, scoped, tag = 'internal scratch']
  #allocation2 [shape = 'f32[1,1]{1,0:T(1,128)S(1)}', space=vmem, size = 0x200, scoped, tag = 'scoped memory for gene_panel_gnn_forward.1']
  %s0 = inlined_call_operand.vmem [shape: bf16[16,128], index: 0, kind: input, shape index: {}]
  %s1 = inlined_call_operand.vmem [shape: bf16[16,128], index: 1, kind: input, shape index: {}]
  %s2 = inlined_call_operand.vmem [shape: bf16[16,16], index: 2, kind: input, shape index: {}]
  %s3 = inlined_call_operand.vmem [shape: bf16[16,16], index: 3, kind: input, shape index: {}]
  %s4 = inlined_call_operand.vmem [shape: f32[16,1], index: 4, kind: input, shape index: {}]
  %s5 = inlined_call_operand.vmem [shape: f32[16,1], index: 5, kind: input, shape index: {}]
  %s6 = inlined_call_operand.vmem [shape: s32[8,1], index: 6, kind: input, shape index: {}]
  %s7 = inlined_call_operand.vmem [shape: s32[8,1], index: 7, kind: input, shape index: {}]
  %s8 = inlined_call_operand.vmem [shape: bf16[128,128], index: 8, kind: input, shape index: {}]
  %s9 = inlined_call_operand.vmem [shape: bf16[128,128], index: 9, kind: input, shape index: {}]
  %s10 = inlined_call_operand.hbm [shape: f32[1,128], index: 10, kind: input, shape index: {}]
  %s11 = inlined_call_operand.hbm [shape: bf16[128,128], index: 11, kind: input, shape index: {}]
  %s12 = inlined_call_operand.hbm [shape: bf16[128,128], index: 12, kind: input, shape index: {}]
  %s13 = inlined_call_operand.hbm [shape: f32[1,128], index: 13, kind: input, shape index: {}]
  %s14 = inlined_call_operand.hbm [shape: bf16[128,128], index: 14, kind: input, shape index: {}]
  %s15 = inlined_call_operand.hbm [shape: bf16[128,128], index: 15, kind: input, shape index: {}]
  %s16 = inlined_call_operand.hbm [shape: f32[1,128], index: 16, kind: input, shape index: {}]
  %s17 = inlined_call_operand.hbm [shape: bf16[128,128], index: 17, kind: input, shape index: {}]
  %s18 = inlined_call_operand.hbm [shape: bf16[128,128], index: 18, kind: input, shape index: {}]
  %s19 = inlined_call_operand.hbm [shape: f32[1,128], index: 19, kind: input, shape index: {}]
  %s20 = inlined_call_operand.hbm [shape: bf16[128,128], index: 20, kind: input, shape index: {}]
  %s21 = inlined_call_operand.<no memory space> [shape: f32[1,1], index: 21, kind: input, shape index: {}]
  %s22 = inlined_call_operand.vmem [shape: f32[8,1], index: 22, kind: output, shape index: {}]
  %s23 = sld [smem:[#allocation0]]
  $region142: #{gene_panel_gnn_forward.1} parent=0
    _
  %s25 = ssub.s32 1, %s23
  %s26 = scalar_select 0, %s25, %s23
  %v27 = vstv %s21
  %28 = vst [vmem:[#allocation2] sm:$0x1] %v27
  $region1: #{gene_panel_gnn_forward.1} parent=0
    #allocation3 [shape = 'u8[512]{0}', space=vmem, size = 0x400, scoped, tag = 'input window, operand 10, single buffered']
    #allocation4 [shape = 's32[1]{0}', space=sflag, size = 0x4, scoped, tag = 'scoped memory for gene_panel_gnn_forward.1']
    #allocation5 [shape = 'u8[32768]{0}', space=vmem, size = 0x8000, scoped, tag = 'input window, operand 11, single buffered']
    #allocation6 [shape = 's32[1]{0}', space=sflag, size = 0x4, scoped, tag = 'scoped memory for gene_panel_gnn_forward.1']
    #allocation7 [shape = 'u8[32768]{0}', space=vmem, size = 0x8000, scoped, tag = 'input window, operand 12, single buffered']
    #allocation8 [shape = 'u8[512]{0}', space=vmem, size = 0x400, scoped, tag = 'input window, operand 13, single buffered']
    #allocation9 [shape = 's32[1]{0}', space=sflag, size = 0x4, scoped, tag = 'scoped memory for gene_panel_gnn_forward.1']
    #allocation10 [shape = 'u8[32768]{0}', space=vmem, size = 0x8000, scoped, tag = 'input window, operand 14, single buffered']
    #allocation11 [shape = 'u8[32768]{0}', space=vmem, size = 0x8000, scoped, tag = 'input window, operand 15, single buffered']
    #allocation12 [shape = 's32[1]{0}', space=sflag, size = 0x4, scoped, tag = 'scoped memory for gene_panel_gnn_forward.1']
    #allocation13 [shape = 'u8[512]{0}', space=vmem, size = 0x400, scoped, tag = 'input window, operand 16, single buffered']
    #allocation14 [shape = 'u8[32768]{0}', space=vmem, size = 0x8000, scoped, tag = 'input window, operand 17, single buffered']
    #allocation15 [shape = 's32[1]{0}', space=sflag, size = 0x4, scoped, tag = 'scoped memory for gene_panel_gnn_forward.1']
    #allocation16 [shape = 'u8[32768]{0}', space=vmem, size = 0x8000, scoped, tag = 'input window, operand 18, single buffered']
    #allocation17 [shape = 'u8[512]{0}', space=vmem, size = 0x400, scoped, tag = 'input window, operand 19, single buffered']
    #allocation18 [shape = 's32[1]{0}', space=sflag, size = 0x4, scoped, tag = 'scoped memory for gene_panel_gnn_forward.1']
    #allocation19 [shape = 'u8[32768]{0}', space=vmem, size = 0x8000, scoped, tag = 'input window, operand 20, single buffered']
    %29 = vsyncpa [#allocation4], 0
    %30 = vsyncpa [#allocation6], 0
    %31 = vsyncpa [#allocation9], 0
    %32 = vsyncpa [#allocation12], 0
    %33 = vsyncpa [#allocation15], 0
    %34 = vsyncpa [#allocation18], 0
    // Predicated region
    $region2: #{gene_panel_gnn_forward.1} parent=1 // pred_check
      _
    $region3: #{gene_panel_gnn_forward.1} parent=1 // pred_check_branch
      %36 = sbr.rel (0) target = $region5
    $region4: #{gene_panel_gnn_forward.1} parent=1 // pred_region
      _
    $region5: #{gene_panel_gnn_forward.1} parent=1 // pred_fallthru
      _
    // Predicated region
    $region6: #{gene_panel_gnn_forward.1} parent=1 // pred_check
      _
    $region7: #{gene_panel_gnn_forward.1} parent=1 // pred_check_branch
      %38 = sbr.rel (0) target = $region9
    $region8: #{gene_panel_gnn_forward.1} parent=1 // pred_region
      _
    $region9: #{gene_panel_gnn_forward.1} parent=1 // pred_fallthru
      _
    // Predicated region
    $region10: #{gene_panel_gnn_forward.1} parent=1 // pred_check
      _
    $region11: #{gene_panel_gnn_forward.1} parent=1 // pred_check_branch
      %40 = sbr.rel (0) target = $region13
    $region12: #{gene_panel_gnn_forward.1} parent=1 // pred_region
      _
    $region13: #{gene_panel_gnn_forward.1} parent=1 // pred_fallthru
      _
    // Predicated region
    $region14: #{gene_panel_gnn_forward.1} parent=1 // pred_check
      _
    $region15: #{gene_panel_gnn_forward.1} parent=1 // pred_check_branch
      %42 = sbr.rel (0) target = $region17
    $region16: #{gene_panel_gnn_forward.1} parent=1 // pred_region
      _
    $region17: #{gene_panel_gnn_forward.1} parent=1 // pred_fallthru
      _
    // Predicated region
    $region18: #{gene_panel_gnn_forward.1} parent=1 // pred_check
      _
    $region19: #{gene_panel_gnn_forward.1} parent=1 // pred_check_branch
      %44 = sbr.rel (0) target = $region21
    $region20: #{gene_panel_gnn_forward.1} parent=1 // pred_region
      _
    $region21: #{gene_panel_gnn_forward.1} parent=1 // pred_fallthru
      _
    // Predicated region
    $region22: #{gene_panel_gnn_forward.1} parent=1 // pred_check
      _
    $region23: #{gene_panel_gnn_forward.1} parent=1 // pred_check_branch
      %46 = sbr.rel (0) target = $region25
    $region24: #{gene_panel_gnn_forward.1} parent=1 // pred_region
      _
    $region25: #{gene_panel_gnn_forward.1} parent=1 // pred_fallthru
      _
    // Predicated region
    $region26: #{gene_panel_gnn_forward.1} parent=1 // pred_check
      _
    $region27: #{gene_panel_gnn_forward.1} parent=1 // pred_check_branch
      %48 = sbr.rel (0) target = $region29
    $region28: #{gene_panel_gnn_forward.1} parent=1 // pred_region
      _
    $region29: #{gene_panel_gnn_forward.1} parent=1 // pred_fallthru
      _
    // Predicated region
    $region30: #{gene_panel_gnn_forward.1} parent=1 // pred_check
      _
    $region31: #{gene_panel_gnn_forward.1} parent=1 // pred_check_branch
      %50 = sbr.rel (0) target = $region33
    $region32: #{gene_panel_gnn_forward.1} parent=1 // pred_region
      _
    $region33: #{gene_panel_gnn_forward.1} parent=1 // pred_fallthru
      _
    // Predicated region
    $region34: #{gene_panel_gnn_forward.1} parent=1 // pred_check
      _
    $region35: #{gene_panel_gnn_forward.1} parent=1 // pred_check_branch
      %52 = sbr.rel (0) target = $region37
    $region36: #{gene_panel_gnn_forward.1} parent=1 // pred_region
      _
    $region37: #{gene_panel_gnn_forward.1} parent=1 // pred_fallthru
      _
    // Predicated region
    $region38: #{gene_panel_gnn_forward.1} parent=1 // pred_check
      _
    $region39: #{gene_panel_gnn_forward.1} parent=1 // pred_check_branch
      %54 = sbr.rel (0) target = $region41
    $region40: #{gene_panel_gnn_forward.1} parent=1 // pred_region
      _
    $region41: #{gene_panel_gnn_forward.1} parent=1 // pred_fallthru
      _
    // Predicated region
    $region42: #{gene_panel_gnn_forward.1} parent=1 // pred_check
      _
    $region43: #{gene_panel_gnn_forward.1} parent=1 // pred_check_branch
      %56 = sbr.rel (0) target = $region45
    $region44: #{gene_panel_gnn_forward.1} parent=1 // pred_region
      %s58 = ssub.s32 16, 16
      %59 = vsyncadd [#allocation4], %s58
      %s61 = sshll.u32 [#allocation3], 4
      %s62 = int_to_ptr.vmem [resolvable:$true] %s61
      %64 = dma.hbm_to_vmem [thread:$0]  %s10, 16, %s62, [#allocation4]
    $region45: #{gene_panel_gnn_forward.1} parent=1 // pred_fallthru
      _
    // Predicated region
    $region46: #{gene_panel_gnn_forward.1} parent=1 // pred_check
      _
    $region47: #{gene_panel_gnn_forward.1} parent=1 // pred_check_branch
      %66 = sbr.rel (0) target = $region49
    $region48: #{gene_panel_gnn_forward.1} parent=1 // pred_region
      %s68 = ssub.s32 1024, 1024
      %69 = vsyncadd [#allocation6], %s68
      %s70 = sshll.u32 [#allocation5], 4
      %s71 = int_to_ptr.vmem [resolvable:$true] %s70
      %76 = dma.hbm_to_vmem [thread:$0]  %s11, 1024, %s71, [#allocation6], 64, 64, 4
    $region49: #{gene_panel_gnn_forward.1} parent=1 // pred_fallthru
      _
    // Predicated region
    $region50: #{gene_panel_gnn_forward.1} parent=1 // pred_check
      _
    $region51: #{gene_panel_gnn_forward.1} parent=1 // pred_check_branch
      %78 = sbr.rel (0) target = $region53
    $region52: #{gene_panel_gnn_forward.1} parent=1 // pred_region
      %s80 = ssub.s32 1024, 1024
      %81 = vsyncadd [#allocation6], %s80
      %s82 = sshll.u32 [#allocation7], 4
      %s83 = int_to_ptr.vmem [resolvable:$true] %s82
      %88 = dma.hbm_to_vmem [thread:$0]  %s12, 1024, %s83, [#allocation6], 64, 64, 4
    $region53: #{gene_panel_gnn_forward.1} parent=1 // pred_fallthru
      _
    // Predicated region
    $region54: #{gene_panel_gnn_forward.1} parent=1 // pred_check
      _
    $region55: #{gene_panel_gnn_forward.1} parent=1 // pred_check_branch
      %90 = sbr.rel (0) target = $region57
    $region56: #{gene_panel_gnn_forward.1} parent=1 // pred_region
      %s92 = ssub.s32 16, 16
      %93 = vsyncadd [#allocation9], %s92
      %s95 = sshll.u32 [#allocation8], 4
      %s96 = int_to_ptr.vmem [resolvable:$true] %s95
      %98 = dma.hbm_to_vmem [thread:$0]  %s13, 16, %s96, [#allocation9]
    $region57: #{gene_panel_gnn_forward.1} parent=1 // pred_fallthru
      _
    // Predicated region
    $region58: #{gene_panel_gnn_forward.1} parent=1 // pred_check
      _
    $region59: #{gene_panel_gnn_forward.1} parent=1 // pred_check_branch
      %100 = sbr.rel (0) target = $region61
    $region60: #{gene_panel_gnn_forward.1} parent=1 // pred_region
      %s102 = ssub.s32 1024, 1024
      %103 = vsyncadd [#allocation9], %s102
      %s104 = sshll.u32 [#allocation10], 4
      %s105 = int_to_ptr.vmem [resolvable:$true] %s104
      %110 = dma.hbm_to_vmem [thread:$0]  %s14, 1024, %s105, [#allocation9], 64, 64, 4
    $region61: #{gene_panel_gnn_forward.1} parent=1 // pred_fallthru
      _
    // Predicated region
    $region62: #{gene_panel_gnn_forward.1} parent=1 // pred_check
      _
    $region63: #{gene_panel_gnn_forward.1} parent=1 // pred_check_branch
      %112 = sbr.rel (0) target = $region65
    $region64: #{gene_panel_gnn_forward.1} parent=1 // pred_region
      %s114 = ssub.s32 1024, 1024
      %115 = vsyncadd [#allocation12], %s114
      %s116 = sshll.u32 [#allocation11], 4
      %s117 = int_to_ptr.vmem [resolvable:$true] %s116
      %122 = dma.hbm_to_vmem [thread:$0]  %s15, 1024, %s117, [#allocation12], 64, 64, 4
    $region65: #{gene_panel_gnn_forward.1} parent=1 // pred_fallthru
      _
    // Predicated region
    $region66: #{gene_panel_gnn_forward.1} parent=1 // pred_check
      _
    $region67: #{gene_panel_gnn_forward.1} parent=1 // pred_check_branch
      %124 = sbr.rel (0) target = $region69
    $region68: #{gene_panel_gnn_forward.1} parent=1 // pred_region
      %s126 = ssub.s32 16, 16
      %127 = vsyncadd [#allocation12], %s126
      %s129 = sshll.u32 [#allocation13], 4
      %s130 = int_to_ptr.vmem [resolvable:$true] %s129
      %132 = dma.hbm_to_vmem [thread:$0]  %s16, 16, %s130, [#allocation12]
    $region69: #{gene_panel_gnn_forward.1} parent=1 // pred_fallthru
      _
    // Predicated region
    $region70: #{gene_panel_gnn_forward.1} parent=1 // pred_check
      _
    $region71: #{gene_panel_gnn_forward.1} parent=1 // pred_check_branch
      %134 = sbr.rel (0) target = $region73
    $region72: #{gene_panel_gnn_forward.1} parent=1 // pred_region
      %s136 = ssub.s32 1024, 1024
      %137 = vsyncadd [#allocation15], %s136
      %s138 = sshll.u32 [#allocation14], 4
      %s139 = int_to_ptr.vmem [resolvable:$true] %s138
      %144 = dma.hbm_to_vmem [thread:$0]  %s17, 1024, %s139, [#allocation15], 64, 64, 4
    $region73: #{gene_panel_gnn_forward.1} parent=1 // pred_fallthru
      _
    // Predicated region
    $region74: #{gene_panel_gnn_forward.1} parent=1 // pred_check
      _
    $region75: #{gene_panel_gnn_forward.1} parent=1 // pred_check_branch
      %146 = sbr.rel (0) target = $region77
    $region76: #{gene_panel_gnn_forward.1} parent=1 // pred_region
      %s148 = ssub.s32 1024, 1024
      %149 = vsyncadd [#allocation15], %s148
      %s150 = sshll.u32 [#allocation16], 4
      %s151 = int_to_ptr.vmem [resolvable:$true] %s150
      %156 = dma.hbm_to_vmem [thread:$0]  %s18, 1024, %s151, [#allocation15], 64, 64, 4
    $region77: #{gene_panel_gnn_forward.1} parent=1 // pred_fallthru
      _
    // Predicated region
    $region78: #{gene_panel_gnn_forward.1} parent=1 // pred_check
      _
    $region79: #{gene_panel_gnn_forward.1} parent=1 // pred_check_branch
      %158 = sbr.rel (0) target = $region81
    $region80: #{gene_panel_gnn_forward.1} parent=1 // pred_region
      %s160 = ssub.s32 16, 16
      %161 = vsyncadd [#allocation18], %s160
      %s163 = sshll.u32 [#allocation17], 4
      %s164 = int_to_ptr.vmem [resolvable:$true] %s163
      %166 = dma.hbm_to_vmem [thread:$0]  %s19, 16, %s164, [#allocation18]
    $region81: #{gene_panel_gnn_forward.1} parent=1 // pred_fallthru
      _
    // Predicated region
    $region82: #{gene_panel_gnn_forward.1} parent=1 // pred_check
      _
    $region83: #{gene_panel_gnn_forward.1} parent=1 // pred_check_branch
      %168 = sbr.rel (0) target = $region85
    $region84: #{gene_panel_gnn_forward.1} parent=1 // pred_region
      %s170 = ssub.s32 1024, 1024
      %171 = vsyncadd [#allocation18], %s170
      %s172 = sshll.u32 [#allocation19], 4
      %s173 = int_to_ptr.vmem [resolvable:$true] %s172
      %178 = dma.hbm_to_vmem [thread:$0]  %s20, 1024, %s173, [#allocation18], 64, 64, 4
    $region85: #{gene_panel_gnn_forward.1} parent=1 // pred_fallthru
      _
    // Predicated region
    $region86: #{gene_panel_gnn_forward.1} parent=1 // pred_check
      _
    $region87: #{gene_panel_gnn_forward.1} parent=1 // pred_check_branch
      %180 = sbr.rel (0) target = $region89
    $region88: #{gene_panel_gnn_forward.1} parent=1 // pred_region
      _
    $region89: #{gene_panel_gnn_forward.1} parent=1 // pred_fallthru
      _
    // Predicated region
    $region90: #{gene_panel_gnn_forward.1} parent=1 // pred_check
      _
    $region91: #{gene_panel_gnn_forward.1} parent=1 // pred_check_branch
      %182 = sbr.rel (0) target = $region93
    $region92: #{gene_panel_gnn_forward.1} parent=1 // pred_region
      %183 = dma.done [#allocation4], 16
    $region93: #{gene_panel_gnn_forward.1} parent=1 // pred_fallthru
      _
    // Predicated region
    $region94: #{gene_panel_gnn_forward.1} parent=1 // pred_check
      _
    $region95: #{gene_panel_gnn_forward.1} parent=1 // pred_check_branch
      %185 = sbr.rel (0) target = $region97
    $region96: #{gene_panel_gnn_forward.1} parent=1 // pred_region
      %186 = dma.done [#allocation6], 1024
    $region97: #{gene_panel_gnn_forward.1} parent=1 // pred_fallthru
      _
    // Predicated region
    $region98: #{gene_panel_gnn_forward.1} parent=1 // pred_check
      _
    $region99: #{gene_panel_gnn_forward.1} parent=1 // pred_check_branch
      %188 = sbr.rel (0) target = $region101
    $region100: #{gene_panel_gnn_forward.1} parent=1 // pred_region
      %189 = dma.done [#allocation6], 1024
    $region101: #{gene_panel_gnn_forward.1} parent=1 // pred_fallthru
      _
    // Predicated region
    $region102: #{gene_panel_gnn_forward.1} parent=1 // pred_check
      _
    $region103: #{gene_panel_gnn_forward.1} parent=1 // pred_check_branch
      %191 = sbr.rel (0) target = $region105
    $region104: #{gene_panel_gnn_forward.1} parent=1 // pred_region
      %192 = dma.done [#allocation9], 16
    $region105: #{gene_panel_gnn_forward.1} parent=1 // pred_fallthru
      _
    // Predicated region
    $region106: #{gene_panel_gnn_forward.1} parent=1 // pred_check
      _
    $region107: #{gene_panel_gnn_forward.1} parent=1 // pred_check_branch
      %194 = sbr.rel (0) target = $region109
    $region108: #{gene_panel_gnn_forward.1} parent=1 // pred_region
      %195 = dma.done [#allocation9], 1024
    $region109: #{gene_panel_gnn_forward.1} parent=1 // pred_fallthru
      _
    // Predicated region
    $region110: #{gene_panel_gnn_forward.1} parent=1 // pred_check
      _
    $region111: #{gene_panel_gnn_forward.1} parent=1 // pred_check_branch
      %197 = sbr.rel (0) target = $region113
    $region112: #{gene_panel_gnn_forward.1} parent=1 // pred_region
      %198 = dma.done [#allocation12], 1024
    $region113: #{gene_panel_gnn_forward.1} parent=1 // pred_fallthru
      _
    // Predicated region
    $region114: #{gene_panel_gnn_forward.1} parent=1 // pred_check
      _
    $region115: #{gene_panel_gnn_forward.1} parent=1 // pred_check_branch
      %200 = sbr.rel (0) target = $region117
    $region116: #{gene_panel_gnn_forward.1} parent=1 // pred_region
      %201 = dma.done [#allocation12], 16
    $region117: #{gene_panel_gnn_forward.1} parent=1 // pred_fallthru
      _
    // Predicated region
    $region118: #{gene_panel_gnn_forward.1} parent=1 // pred_check
      _
    $region119: #{gene_panel_gnn_forward.1} parent=1 // pred_check_branch
      %203 = sbr.rel (0) target = $region121
    $region120: #{gene_panel_gnn_forward.1} parent=1 // pred_region
      %204 = dma.done [#allocation15], 1024
    $region121: #{gene_panel_gnn_forward.1} parent=1 // pred_fallthru
      _
    // Predicated region
    $region122: #{gene_panel_gnn_forward.1} parent=1 // pred_check
      _
    $region123: #{gene_panel_gnn_forward.1} parent=1 // pred_check_branch
      %206 = sbr.rel (0) target = $region125
    $region124: #{gene_panel_gnn_forward.1} parent=1 // pred_region
      %207 = dma.done [#allocation15], 1024
    $region125: #{gene_panel_gnn_forward.1} parent=1 // pred_fallthru
      _
    // Predicated region
    $region126: #{gene_panel_gnn_forward.1} parent=1 // pred_check
      _
    $region127: #{gene_panel_gnn_forward.1} parent=1 // pred_check_branch
      %209 = sbr.rel (0) target = $region129
    $region128: #{gene_panel_gnn_forward.1} parent=1 // pred_region
      %210 = dma.done [#allocation18], 16
    $region129: #{gene_panel_gnn_forward.1} parent=1 // pred_fallthru
      _
    // Predicated region
    $region130: #{gene_panel_gnn_forward.1} parent=1 // pred_check
      _
    $region131: #{gene_panel_gnn_forward.1} parent=1 // pred_check_branch
      %212 = sbr.rel (0) target = $region133
    $region132: #{gene_panel_gnn_forward.1} parent=1 // pred_region
      %213 = dma.done [#allocation18], 1024
    $region133: #{gene_panel_gnn_forward.1} parent=1 // pred_fallthru
      _
    %v215 = vld [vmem:[%s0] sm:$0xf]
    %v216 = vld [vmem:[%s0 + $0x4] sm:$0xf]
    %v217 = vld [vmem:[%s1] sm:$0xf]
    %v218 = vld [vmem:[%s1 + $0x4] sm:$0xf]
    %v219 = vld [vmem:[%s2] sm:$0xf]
    %v220 = vld [vmem:[%s2 + $0x4] sm:$0xf]
    %v221 = vld [vmem:[%s3] sm:$0xf]
    %v222 = vld [vmem:[%s3 + $0x4] sm:$0xf]
    %v223 = vld [vmem:[%s4] sm:$0xff]
    %v224 = vld [vmem:[%s4 + $0x8] sm:$0xff]
    %v225 = vld [vmem:[%s5] sm:$0xff]
    %v226 = vld [vmem:[%s5 + $0x8] sm:$0xff]
    %v229 = vunpack.c.l.b16 %v219
    %v230 = vunpack.c.l.b16 %v220
    %v231 = vpack.c.b16 %v230, %v229
    %v234 = vunpack.c.l.b16 %v217
    %v235 = vunpack.c.l.b16 %v218
    %v236 = vpack.c.b16 %v235, %v234
    %vm238 = vcmask 130048
    %v240 = vsel %vm238, %v231, 0
    %242 = vmatprep.subr.bf16.mxu0 0
    %243 = vmatpush1.bf16.msra.mxu0 %v236
    %244 = vmatprep.subr.bf16.mxu0 0
    %245 = vmatpush1.bf16.msra.mxu0 0
    %246 = vmatprep.subr.bf16.mxu0 0
    %247 = vmatpush1.bf16.msra.mxu0 0
    %248 = vmatprep.subr.bf16.mxu0 0
    %249 = vmatpush1.bf16.msra.mxu0 0
    %250 = vmatprep.subr.bf16.mxu0 0
    %251 = vmatpush1.bf16.msra.mxu0 0
    %252 = vmatprep.subr.bf16.mxu0 0
    %253 = vmatpush1.bf16.msra.mxu0 0
    %254 = vmatprep.subr.bf16.mxu0 0
    %255 = vmatpush1.bf16.msra.mxu0 0
    %256 = vmatprep.subr.bf16.mxu0 0
    %257 = vmatpush1.bf16.msra.mxu0 0
    %258 = vmatprep.subr.bf16.mxu0 0
    %259 = vmatpush1.bf16.msra.mxu0 0
    %260 = vmatprep.subr.bf16.mxu0 0
    %261 = vmatpush1.bf16.msra.mxu0 0
    %262 = vmatprep.subr.bf16.mxu0 0
    %263 = vmatpush1.bf16.msra.mxu0 0
    %264 = vmatprep.subr.bf16.mxu0 0
    %265 = vmatpush1.bf16.msra.mxu0 0
    %266 = vmatprep.subr.bf16.mxu0 0
    %267 = vmatpush1.bf16.msra.mxu0 0
    %268 = vmatprep.subr.bf16.mxu0 0
    %269 = vmatpush1.bf16.msra.mxu0 0
    %270 = vmatprep.subr.bf16.mxu0 0
    %271 = vmatpush1.bf16.msra.mxu0 0
    %272 = vmatprep.subr.bf16.mxu0 0
    %273 = vmatpush1.bf16.msra.mxu0 0
    %274 = vmatprep.mubr.bf16.mxu0 0
    %275 = vmatmul.mubr.bf16.gmra.mrb[0].mxu0 %v240
    %v276 = vpop.f32.mrb[0].mxu0
    %v277 = vadd.f32 0.0, %v276
    %v278 = vpop.f32.mrb[0].mxu0
    %v279 = vpop.f32.mrb[0].mxu0
    %v280 = vadd.f32 0.0, %v279
    %v281 = vpop.f32.mrb[0].mxu0
    %282 = vdwg.mxu0
    %284 = vset.pattern.permute.xlu0 0
    %285 = vperm.xlu0 %284, %v223
    %v286 = vpop.permute.xlu0 %285
    %289 = vset.pattern.permute.xlu0 0
    %290 = vperm.xlu0 %289, %v224
    %v291 = vpop.permute.xlu0 %290
    %v293 = vmul.f32 %v277, %v286
    %v294 = vmul.f32 %v280, %v291
    %v295 = vpack.c.bf16 %v294, %v293
    %v298 = vunpack.c.l.b16 %v221
    %v299 = vunpack.c.l.b16 %v222
    %v300 = vpack.c.b16 %v299, %v298
    %v303 = vunpack.c.l.b16 %v215
    %v304 = vunpack.c.l.b16 %v216
    %v305 = vpack.c.b16 %v304, %v303
    %v308 = vsel %vm238, %v300, 0
    %310 = vmatprep.subr.bf16.mxu0 0
    %311 = vmatpush1.bf16.msra.mxu0 %v305
    %312 = vmatprep.subr.bf16.mxu0 0
    %313 = vmatpush1.bf16.msra.mxu0 0
    %314 = vmatprep.subr.bf16.mxu0 0
    %315 = vmatpush1.bf16.msra.mxu0 0
    %316 = vmatprep.subr.bf16.mxu0 0
    %317 = vmatpush1.bf16.msra.mxu0 0
    %318 = vmatprep.subr.bf16.mxu0 0
    %319 = vmatpush1.bf16.msra.mxu0 0
    %320 = vmatprep.subr.bf16.mxu0 0
    %321 = vmatpush1.bf16.msra.mxu0 0
    %322 = vmatprep.subr.bf16.mxu0 0
    %323 = vmatpush1.bf16.msra.mxu0 0
    %324 = vmatprep.subr.bf16.mxu0 0
    %325 = vmatpush1.bf16.msra.mxu0 0
    %326 = vmatprep.subr.bf16.mxu0 0
    %327 = vmatpush1.bf16.msra.mxu0 0
    %328 = vmatprep.subr.bf16.mxu0 0
    %329 = vmatpush1.bf16.msra.mxu0 0
    %330 = vmatprep.subr.bf16.mxu0 0
    %331 = vmatpush1.bf16.msra.mxu0 0
    %332 = vmatprep.subr.bf16.mxu0 0
    %333 = vmatpush1.bf16.msra.mxu0 0
    %334 = vmatprep.subr.bf16.mxu0 0
    %335 = vmatpush1.bf16.msra.mxu0 0
    %336 = vmatprep.subr.bf16.mxu0 0
    %337 = vmatpush1.bf16.msra.mxu0 0
    %338 = vmatprep.subr.bf16.mxu0 0
    %339 = vmatpush1.bf16.msra.mxu0 0
    %340 = vmatprep.subr.bf16.mxu0 0
    %341 = vmatpush1.bf16.msra.mxu0 0
    %342 = vmatprep.mubr.bf16.mxu0 0
    %343 = vmatmul.mubr.bf16.gmra.mrb[0].mxu0 %v308
    %v344 = vpop.f32.mrb[0].mxu0
    %v345 = vadd.f32 0.0, %v344
    %v346 = vpop.f32.mrb[0].mxu0
    %v347 = vpop.f32.mrb[0].mxu0
    %v348 = vadd.f32 0.0, %v347
    %v349 = vpop.f32.mrb[0].mxu0
    %350 = vdwg.mxu0
    %352 = vset.pattern.permute.xlu0 0
    %353 = vperm.xlu0 %352, %v225
    %v354 = vpop.permute.xlu0 %353
    %357 = vset.pattern.permute.xlu0 0
    %358 = vperm.xlu0 %357, %v226
    %v359 = vpop.permute.xlu0 %358
    %v361 = vmul.f32 %v345, %v354
    %v362 = vmul.f32 %v348, %v359
    %v363 = vpack.c.bf16 %v362, %v361
    %v364 = vld [vmem:[%s8] sm:$0xf]
    %v365 = vld [vmem:[%s8 + $0x4] sm:$0xf]
    %v366 = vld [vmem:[%s8 + $0x8] sm:$0xf]
    %v367 = vld [vmem:[%s8 + $0xc] sm:$0xf]
    %v368 = vld [vmem:[%s8 + $0x10] sm:$0xf]
    %v369 = vld [vmem:[%s8 + $0x14] sm:$0xf]
    %v370 = vld [vmem:[%s8 + $0x18] sm:$0xf]
    %v371 = vld [vmem:[%s8 + $0x1c] sm:$0xf]
    %v372 = vld [vmem:[%s8 + $0x20] sm:$0xf]
    %v373 = vld [vmem:[%s8 + $0x24] sm:$0xf]
    %v374 = vld [vmem:[%s8 + $0x28] sm:$0xf]
    %v375 = vld [vmem:[%s8 + $0x2c] sm:$0xf]
    %v376 = vld [vmem:[%s8 + $0x30] sm:$0xf]
    %v377 = vld [vmem:[%s8 + $0x34] sm:$0xf]
    %v378 = vld [vmem:[%s8 + $0x38] sm:$0xf]
    %v379 = vld [vmem:[%s8 + $0x3c] sm:$0xf]
    %v380 = vld [vmem:[%s9] sm:$0xf]
    %v381 = vld [vmem:[%s9 + $0x4] sm:$0xf]
    %v382 = vld [vmem:[%s9 + $0x8] sm:$0xf]
    %v383 = vld [vmem:[%s9 + $0xc] sm:$0xf]
    %v384 = vld [vmem:[%s9 + $0x10] sm:$0xf]
    %v385 = vld [vmem:[%s9 + $0x14] sm:$0xf]
    %v386 = vld [vmem:[%s9 + $0x18] sm:$0xf]
    %v387 = vld [vmem:[%s9 + $0x1c] sm:$0xf]
    %v388 = vld [vmem:[%s9 + $0x20] sm:$0xf]
    %v389 = vld [vmem:[%s9 + $0x24] sm:$0xf]
    %v390 = vld [vmem:[%s9 + $0x28] sm:$0xf]
    %v391 = vld [vmem:[%s9 + $0x2c] sm:$0xf]
    %v392 = vld [vmem:[%s9 + $0x30] sm:$0xf]
    %v393 = vld [vmem:[%s9 + $0x34] sm:$0xf]
    %v394 = vld [vmem:[%s9 + $0x38] sm:$0xf]
    %v395 = vld [vmem:[%s9 + $0x3c] sm:$0xf]
    %v412 = vunpack.c.l.b16 %v380
    %v413 = vunpack.c.l.b16 %v381
    %v414 = vunpack.c.l.b16 %v382
    %v415 = vunpack.c.l.b16 %v383
    %v416 = vunpack.c.l.b16 %v384
    %v417 = vunpack.c.l.b16 %v385
    %v418 = vunpack.c.l.b16 %v386
    %v419 = vunpack.c.l.b16 %v387
    %v420 = vunpack.c.l.b16 %v388
    %v421 = vunpack.c.l.b16 %v389
    %v422 = vunpack.c.l.b16 %v390
    %v423 = vunpack.c.l.b16 %v391
    %v424 = vunpack.c.l.b16 %v392
    %v425 = vunpack.c.l.b16 %v393
    %v426 = vunpack.c.l.b16 %v394
    %v427 = vunpack.c.l.b16 %v395
    %v428 = vpack.c.b16 %v413, %v412
    %v429 = vpack.c.b16 %v415, %v414
    %v430 = vpack.c.b16 %v417, %v416
    %v431 = vpack.c.b16 %v419, %v418
    %v432 = vpack.c.b16 %v421, %v420
    %v433 = vpack.c.b16 %v423, %v422
    %v434 = vpack.c.b16 %v425, %v424
    %v435 = vpack.c.b16 %v427, %v426
    %444 = vmatprep.subr.bf16.mxu0 0
    %445 = vmatpush1.bf16.msra.mxu0 %v428
    %446 = vmatprep.subr.bf16.mxu0 0
    %447 = vmatpush1.bf16.msra.mxu0 %v429
    %448 = vmatprep.subr.bf16.mxu0 0
    %449 = vmatpush1.bf16.msra.mxu0 %v430
    %450 = vmatprep.subr.bf16.mxu0 0
    %451 = vmatpush1.bf16.msra.mxu0 %v431
    %452 = vmatprep.subr.bf16.mxu0 0
    %453 = vmatpush1.bf16.msra.mxu0 %v432
    %454 = vmatprep.subr.bf16.mxu0 0
    %455 = vmatpush1.bf16.msra.mxu0 %v433
    %456 = vmatprep.subr.bf16.mxu0 0
    %457 = vmatpush1.bf16.msra.mxu0 %v434
    %458 = vmatprep.subr.bf16.mxu0 0
    %459 = vmatpush1.bf16.msra.mxu0 %v435
    %460 = vmatprep.subr.bf16.mxu0 0
    %461 = vmatpush1.bf16.msra.mxu0 0
    %462 = vmatprep.subr.bf16.mxu0 0
    %463 = vmatpush1.bf16.msra.mxu0 0
    %464 = vmatprep.subr.bf16.mxu0 0
    %465 = vmatpush1.bf16.msra.mxu0 0
    %466 = vmatprep.subr.bf16.mxu0 0
    %467 = vmatpush1.bf16.msra.mxu0 0
    %468 = vmatprep.subr.bf16.mxu0 0
    %469 = vmatpush1.bf16.msra.mxu0 0
    %470 = vmatprep.subr.bf16.mxu0 0
    %471 = vmatpush1.bf16.msra.mxu0 0
    %472 = vmatprep.subr.bf16.mxu0 0
    %473 = vmatpush1.bf16.msra.mxu0 0
    %474 = vmatprep.subr.bf16.mxu0 0
    %475 = vmatpush1.bf16.msra.mxu0 0
    %476 = vmatprep.mubr.bf16.mxu0 0
    %477 = vmatmul.mubr.bf16.gmra.mrb[0].mxu0 %v295
    %v478 = vpop.f32.mrb[0].mxu0
    %v479 = vadd.f32 0.0, %v478
    %v480 = vpop.f32.mrb[0].mxu0
    %v481 = vpop.f32.mrb[0].mxu0
    %v482 = vadd.f32 0.0, %v481
    %v483 = vpop.f32.mrb[0].mxu0
    %484 = vdwg.mxu0
    %v501 = vunpack.c.l.b16 %v364
    %v502 = vunpack.c.l.b16 %v365
    %v503 = vunpack.c.l.b16 %v366
    %v504 = vunpack.c.l.b16 %v367
    %v505 = vunpack.c.l.b16 %v368
    %v506 = vunpack.c.l.b16 %v369
    %v507 = vunpack.c.l.b16 %v370
    %v508 = vunpack.c.l.b16 %v371
    %v509 = vunpack.c.l.b16 %v372
    %v510 = vunpack.c.l.b16 %v373
    %v511 = vunpack.c.l.b16 %v374
    %v512 = vunpack.c.l.b16 %v375
    %v513 = vunpack.c.l.b16 %v376
    %v514 = vunpack.c.l.b16 %v377
    %v515 = vunpack.c.l.b16 %v378
    %v516 = vunpack.c.l.b16 %v379
    %v517 = vpack.c.b16 %v502, %v501
    %v518 = vpack.c.b16 %v504, %v503
    %v519 = vpack.c.b16 %v506, %v505
    %v520 = vpack.c.b16 %v508, %v507
    %v521 = vpack.c.b16 %v510, %v509
    %v522 = vpack.c.b16 %v512, %v511
    %v523 = vpack.c.b16 %v514, %v513
    %v524 = vpack.c.b16 %v516, %v515
    %533 = vmatprep.subr.bf16.mxu0 0
    %534 = vmatpush1.bf16.msra.mxu0 %v517
    %535 = vmatprep.subr.bf16.mxu0 0
    %536 = vmatpush1.bf16.msra.mxu0 %v518
    %537 = vmatprep.subr.bf16.mxu0 0
    %538 = vmatpush1.bf16.msra.mxu0 %v519
    %539 = vmatprep.subr.bf16.mxu0 0
    %540 = vmatpush1.bf16.msra.mxu0 %v520
    %541 = vmatprep.subr.bf16.mxu0 0
    %542 = vmatpush1.bf16.msra.mxu0 %v521
    %543 = vmatprep.subr.bf16.mxu0 0
    %544 = vmatpush1.bf16.msra.mxu0 %v522
    %545 = vmatprep.subr.bf16.mxu0 0
    %546 = vmatpush1.bf16.msra.mxu0 %v523
    %547 = vmatprep.subr.bf16.mxu0 0
    %548 = vmatpush1.bf16.msra.mxu0 %v524
    %549 = vmatprep.subr.bf16.mxu0 0
    %550 = vmatpush1.bf16.msra.mxu0 0
    %551 = vmatprep.subr.bf16.mxu0 0
    %552 = vmatpush1.bf16.msra.mxu0 0
    %553 = vmatprep.subr.bf16.mxu0 0
    %554 = vmatpush1.bf16.msra.mxu0 0
    %555 = vmatprep.subr.bf16.mxu0 0
    %556 = vmatpush1.bf16.msra.mxu0 0
    %557 = vmatprep.subr.bf16.mxu0 0
    %558 = vmatpush1.bf16.msra.mxu0 0
    %559 = vmatprep.subr.bf16.mxu0 0
    %560 = vmatpush1.bf16.msra.mxu0 0
    %561 = vmatprep.subr.bf16.mxu0 0
    %562 = vmatpush1.bf16.msra.mxu0 0
    %563 = vmatprep.subr.bf16.mxu0 0
    %564 = vmatpush1.bf16.msra.mxu0 0
    %565 = vmatprep.mubr.bf16.mxu0 0
    %566 = vmatmul.mubr.bf16.gmra.mrb[0].mxu0 %v305
    %v567 = vpop.f32.mrb[0].mxu0
    %v568 = vadd.f32 %v479, %v567
    %v569 = vpop.f32.mrb[0].mxu0
    %v570 = vpop.f32.mrb[0].mxu0
    %v571 = vadd.f32 %v482, %v570
    %v572 = vpop.f32.mrb[0].mxu0
    %573 = vdwg.mxu0
    %v574 = vld [vmem:[#allocation3] sm:$0x1]
    %v576 = vlaneseq
    %v577 = vshrl.u32 %v576, 7
    %v578 = vsub.s32 0, %v577
    %v579 = vrot.slane %v574, %v578
    %v581 = vadd.f32 %v568, %v579
    %v582 = vadd.f32 %v571, %v579
    %v583 = vmax.f32 %v581, 0.0
    %v584 = vmax.f32 %v582, 0.0
    %v585 = vpack.c.bf16 %v584, %v583
    %v586 = vld [vmem:[#allocation5] sm:$0xf]
    %v587 = vld [vmem:[#allocation5 + $0x4] sm:$0xf]
    %v588 = vld [vmem:[#allocation5 + $0x8] sm:$0xf]
    %v589 = vld [vmem:[#allocation5 + $0xc] sm:$0xf]
    %v590 = vld [vmem:[#allocation5 + $0x10] sm:$0xf]
    %v591 = vld [vmem:[#allocation5 + $0x14] sm:$0xf]
    %v592 = vld [vmem:[#allocation5 + $0x18] sm:$0xf]
    %v593 = vld [vmem:[#allocation5 + $0x1c] sm:$0xf]
    %v594 = vld [vmem:[#allocation5 + $0x20] sm:$0xf]
    %v595 = vld [vmem:[#allocation5 + $0x24] sm:$0xf]
    %v596 = vld [vmem:[#allocation5 + $0x28] sm:$0xf]
    %v597 = vld [vmem:[#allocation5 + $0x2c] sm:$0xf]
    %v598 = vld [vmem:[#allocation5 + $0x30] sm:$0xf]
    %v599 = vld [vmem:[#allocation5 + $0x34] sm:$0xf]
    %v600 = vld [vmem:[#allocation5 + $0x38] sm:$0xf]
    %v601 = vld [vmem:[#allocation5 + $0x3c] sm:$0xf]
    %v602 = vld [vmem:[#allocation7] sm:$0xf]
    %v603 = vld [vmem:[#allocation7 + $0x4] sm:$0xf]
    %v604 = vld [vmem:[#allocation7 + $0x8] sm:$0xf]
    %v605 = vld [vmem:[#allocation7 + $0xc] sm:$0xf]
    %v606 = vld [vmem:[#allocation7 + $0x10] sm:$0xf]
    %v607 = vld [vmem:[#allocation7 + $0x14] sm:$0xf]
    %v608 = vld [vmem:[#allocation7 + $0x18] sm:$0xf]
    %v609 = vld [vmem:[#allocation7 + $0x1c] sm:$0xf]
    %v610 = vld [vmem:[#allocation7 + $0x20] sm:$0xf]
    %v611 = vld [vmem:[#allocation7 + $0x24] sm:$0xf]
    %v612 = vld [vmem:[#allocation7 + $0x28] sm:$0xf]
    %v613 = vld [vmem:[#allocation7 + $0x2c] sm:$0xf]
    %v614 = vld [vmem:[#allocation7 + $0x30] sm:$0xf]
    %v615 = vld [vmem:[#allocation7 + $0x34] sm:$0xf]
    %v616 = vld [vmem:[#allocation7 + $0x38] sm:$0xf]
    %v617 = vld [vmem:[#allocation7 + $0x3c] sm:$0xf]
    %v634 = vunpack.c.l.b16 %v602
    %v635 = vunpack.c.l.b16 %v603
    %v636 = vunpack.c.l.b16 %v604
    %v637 = vunpack.c.l.b16 %v605
    %v638 = vunpack.c.l.b16 %v606
    %v639 = vunpack.c.l.b16 %v607
    %v640 = vunpack.c.l.b16 %v608
    %v641 = vunpack.c.l.b16 %v609
    %v642 = vunpack.c.l.b16 %v610
    %v643 = vunpack.c.l.b16 %v611
    %v644 = vunpack.c.l.b16 %v612
    %v645 = vunpack.c.l.b16 %v613
    %v646 = vunpack.c.l.b16 %v614
    %v647 = vunpack.c.l.b16 %v615
    %v648 = vunpack.c.l.b16 %v616
    %v649 = vunpack.c.l.b16 %v617
    %v650 = vpack.c.b16 %v635, %v634
    %v651 = vpack.c.b16 %v637, %v636
    %v652 = vpack.c.b16 %v639, %v638
    %v653 = vpack.c.b16 %v641, %v640
    %v654 = vpack.c.b16 %v643, %v642
    %v655 = vpack.c.b16 %v645, %v644
    %v656 = vpack.c.b16 %v647, %v646
    %v657 = vpack.c.b16 %v649, %v648
    %666 = vmatprep.subr.bf16.mxu0 0
    %667 = vmatpush1.bf16.msra.mxu0 %v650
    %668 = vmatprep.subr.bf16.mxu0 0
    %669 = vmatpush1.bf16.msra.mxu0 %v651
    %670 = vmatprep.subr.bf16.mxu0 0
    %671 = vmatpush1.bf16.msra.mxu0 %v652
    %672 = vmatprep.subr.bf16.mxu0 0
    %673 = vmatpush1.bf16.msra.mxu0 %v653
    %674 = vmatprep.subr.bf16.mxu0 0
    %675 = vmatpush1.bf16.msra.mxu0 %v654
    %676 = vmatprep.subr.bf16.mxu0 0
    %677 = vmatpush1.bf16.msra.mxu0 %v655
    %678 = vmatprep.subr.bf16.mxu0 0
    %679 = vmatpush1.bf16.msra.mxu0 %v656
    %680 = vmatprep.subr.bf16.mxu0 0
    %681 = vmatpush1.bf16.msra.mxu0 %v657
    %682 = vmatprep.subr.bf16.mxu0 0
    %683 = vmatpush1.bf16.msra.mxu0 0
    %684 = vmatprep.subr.bf16.mxu0 0
    %685 = vmatpush1.bf16.msra.mxu0 0
    %686 = vmatprep.subr.bf16.mxu0 0
    %687 = vmatpush1.bf16.msra.mxu0 0
    %688 = vmatprep.subr.bf16.mxu0 0
    %689 = vmatpush1.bf16.msra.mxu0 0
    %690 = vmatprep.subr.bf16.mxu0 0
    %691 = vmatpush1.bf16.msra.mxu0 0
    %692 = vmatprep.subr.bf16.mxu0 0
    %693 = vmatpush1.bf16.msra.mxu0 0
    %694 = vmatprep.subr.bf16.mxu0 0
    %695 = vmatpush1.bf16.msra.mxu0 0
    %696 = vmatprep.subr.bf16.mxu0 0
    %697 = vmatpush1.bf16.msra.mxu0 0
    %698 = vmatprep.mubr.bf16.mxu0 0
    %699 = vmatmul.mubr.bf16.gmra.mrb[0].mxu0 %v363
    %v700 = vpop.f32.mrb[0].mxu0
    %v701 = vadd.f32 0.0, %v700
    %v702 = vpop.f32.mrb[0].mxu0
    %v703 = vpop.f32.mrb[0].mxu0
    %v704 = vadd.f32 0.0, %v703
    %v705 = vpop.f32.mrb[0].mxu0
    %706 = vdwg.mxu0
    %v723 = vunpack.c.l.b16 %v586
    %v724 = vunpack.c.l.b16 %v587
    %v725 = vunpack.c.l.b16 %v588
    %v726 = vunpack.c.l.b16 %v589
    %v727 = vunpack.c.l.b16 %v590
    %v728 = vunpack.c.l.b16 %v591
    %v729 = vunpack.c.l.b16 %v592
    %v730 = vunpack.c.l.b16 %v593
    %v731 = vunpack.c.l.b16 %v594
    %v732 = vunpack.c.l.b16 %v595
    %v733 = vunpack.c.l.b16 %v596
    %v734 = vunpack.c.l.b16 %v597
    %v735 = vunpack.c.l.b16 %v598
    %v736 = vunpack.c.l.b16 %v599
    %v737 = vunpack.c.l.b16 %v600
    %v738 = vunpack.c.l.b16 %v601
    %v739 = vpack.c.b16 %v724, %v723
    %v740 = vpack.c.b16 %v726, %v725
    %v741 = vpack.c.b16 %v728, %v727
    %v742 = vpack.c.b16 %v730, %v729
    %v743 = vpack.c.b16 %v732, %v731
    %v744 = vpack.c.b16 %v734, %v733
    %v745 = vpack.c.b16 %v736, %v735
    %v746 = vpack.c.b16 %v738, %v737
    %755 = vmatprep.subr.bf16.mxu0 0
    %756 = vmatpush1.bf16.msra.mxu0 %v739
    %757 = vmatprep.subr.bf16.mxu0 0
    %758 = vmatpush1.bf16.msra.mxu0 %v740
    %759 = vmatprep.subr.bf16.mxu0 0
    %760 = vmatpush1.bf16.msra.mxu0 %v741
    %761 = vmatprep.subr.bf16.mxu0 0
    %762 = vmatpush1.bf16.msra.mxu0 %v742
    %763 = vmatprep.subr.bf16.mxu0 0
    %764 = vmatpush1.bf16.msra.mxu0 %v743
    %765 = vmatprep.subr.bf16.mxu0 0
    %766 = vmatpush1.bf16.msra.mxu0 %v744
    %767 = vmatprep.subr.bf16.mxu0 0
    %768 = vmatpush1.bf16.msra.mxu0 %v745
    %769 = vmatprep.subr.bf16.mxu0 0
    %770 = vmatpush1.bf16.msra.mxu0 %v746
    %771 = vmatprep.subr.bf16.mxu0 0
    %772 = vmatpush1.bf16.msra.mxu0 0
    %773 = vmatprep.subr.bf16.mxu0 0
    %774 = vmatpush1.bf16.msra.mxu0 0
    %775 = vmatprep.subr.bf16.mxu0 0
    %776 = vmatpush1.bf16.msra.mxu0 0
    %777 = vmatprep.subr.bf16.mxu0 0
    %778 = vmatpush1.bf16.msra.mxu0 0
    %779 = vmatprep.subr.bf16.mxu0 0
    %780 = vmatpush1.bf16.msra.mxu0 0
    %781 = vmatprep.subr.bf16.mxu0 0
    %782 = vmatpush1.bf16.msra.mxu0 0
    %783 = vmatprep.subr.bf16.mxu0 0
    %784 = vmatpush1.bf16.msra.mxu0 0
    %785 = vmatprep.subr.bf16.mxu0 0
    %786 = vmatpush1.bf16.msra.mxu0 0
    %787 = vmatprep.mubr.bf16.mxu0 0
    %788 = vmatmul.mubr.bf16.gmra.mrb[0].mxu0 %v236
    %v789 = vpop.f32.mrb[0].mxu0
    %v790 = vadd.f32 %v701, %v789
    %v791 = vpop.f32.mrb[0].mxu0
    %v792 = vpop.f32.mrb[0].mxu0
    %v793 = vadd.f32 %v704, %v792
    %v794 = vpop.f32.mrb[0].mxu0
    %795 = vdwg.mxu0
    %v796 = vld [vmem:[#allocation8] sm:$0x1]
    %v798 = vlaneseq
    %v799 = vshrl.u32 %v798, 7
    %v800 = vsub.s32 0, %v799
    %v801 = vrot.slane %v796, %v800
    %v803 = vadd.f32 %v790, %v801
    %v804 = vadd.f32 %v793, %v801
    %v805 = vmax.f32 %v803, 0.0
    %v806 = vmax.f32 %v804, 0.0
    %v807 = vpack.c.bf16 %v806, %v805
    %808 = vmatprep.subr.bf16.mxu0 0
    %809 = vmatpush1.bf16.msra.mxu0 %v807
    %810 = vmatprep.subr.bf16.mxu0 0
    %811 = vmatpush1.bf16.msra.mxu0 0
    %812 = vmatprep.subr.bf16.mxu0 0
    %813 = vmatpush1.bf16.msra.mxu0 0
    %814 = vmatprep.subr.bf16.mxu0 0
    %815 = vmatpush1.bf16.msra.mxu0 0
    %816 = vmatprep.subr.bf16.mxu0 0
    %817 = vmatpush1.bf16.msra.mxu0 0
    %818 = vmatprep.subr.bf16.mxu0 0
    %819 = vmatpush1.bf16.msra.mxu0 0
    %820 = vmatprep.subr.bf16.mxu0 0
    %821 = vmatpush1.bf16.msra.mxu0 0
    %822 = vmatprep.subr.bf16.mxu0 0
    %823 = vmatpush1.bf16.msra.mxu0 0
    %824 = vmatprep.subr.bf16.mxu0 0
    %825 = vmatpush1.bf16.msra.mxu0 0
    %826 = vmatprep.subr.bf16.mxu0 0
    %827 = vmatpush1.bf16.msra.mxu0 0
    %828 = vmatprep.subr.bf16.mxu0 0
    %829 = vmatpush1.bf16.msra.mxu0 0
    %830 = vmatprep.subr.bf16.mxu0 0
    %831 = vmatpush1.bf16.msra.mxu0 0
    %832 = vmatprep.subr.bf16.mxu0 0
    %833 = vmatpush1.bf16.msra.mxu0 0
    %834 = vmatprep.subr.bf16.mxu0 0
    %835 = vmatpush1.bf16.msra.mxu0 0
    %836 = vmatprep.subr.bf16.mxu0 0
    %837 = vmatpush1.bf16.msra.mxu0 0
    %838 = vmatprep.subr.bf16.mxu0 0
    %839 = vmatpush1.bf16.msra.mxu0 0
    %840 = vmatprep.mubr.bf16.mxu0 0
    %841 = vmatmul.mubr.bf16.gmra.mrb[0].mxu0 %v240
    %v842 = vpop.f32.mrb[0].mxu0
    %v843 = vadd.f32 0.0, %v842
    %v844 = vpop.f32.mrb[0].mxu0
    %v845 = vpop.f32.mrb[0].mxu0
    %v846 = vadd.f32 0.0, %v845
    %v847 = vpop.f32.mrb[0].mxu0
    %848 = vdwg.mxu0
    %v849 = vmul.f32 %v843, %v286
    %v850 = vmul.f32 %v846, %v291
    %v851 = vpack.c.bf16 %v850, %v849
    %852 = vmatprep.subr.bf16.mxu0 0
    %853 = vmatpush1.bf16.msra.mxu0 %v585
    %854 = vmatprep.subr.bf16.mxu0 0
    %855 = vmatpush1.bf16.msra.mxu0 0
    %856 = vmatprep.subr.bf16.mxu0 0
    %857 = vmatpush1.bf16.msra.mxu0 0
    %858 = vmatprep.subr.bf16.mxu0 0
    %859 = vmatpush1.bf16.msra.mxu0 0
    %860 = vmatprep.subr.bf16.mxu0 0
    %861 = vmatpush1.bf16.msra.mxu0 0
    %862 = vmatprep.subr.bf16.mxu0 0
    %863 = vmatpush1.bf16.msra.mxu0 0
    %864 = vmatprep.subr.bf16.mxu0 0
    %865 = vmatpush1.bf16.msra.mxu0 0
    %866 = vmatprep.subr.bf16.mxu0 0
    %867 = vmatpush1.bf16.msra.mxu0 0
    %868 = vmatprep.subr.bf16.mxu0 0
    %869 = vmatpush1.bf16.msra.mxu0 0
    %870 = vmatprep.subr.bf16.mxu0 0
    %871 = vmatpush1.bf16.msra.mxu0 0
    %872 = vmatprep.subr.bf16.mxu0 0
    %873 = vmatpush1.bf16.msra.mxu0 0
    %874 = vmatprep.subr.bf16.mxu0 0
    %875 = vmatpush1.bf16.msra.mxu0 0
    %876 = vmatprep.subr.bf16.mxu0 0
    %877 = vmatpush1.bf16.msra.mxu0 0
    %878 = vmatprep.subr.bf16.mxu0 0
    %879 = vmatpush1.bf16.msra.mxu0 0
    %880 = vmatprep.subr.bf16.mxu0 0
    %881 = vmatpush1.bf16.msra.mxu0 0
    %882 = vmatprep.subr.bf16.mxu0 0
    %883 = vmatpush1.bf16.msra.mxu0 0
    %884 = vmatprep.mubr.bf16.mxu0 0
    %885 = vmatmul.mubr.bf16.gmra.mrb[0].mxu0 %v308
    %v886 = vpop.f32.mrb[0].mxu0
    %v887 = vadd.f32 0.0, %v886
    %v888 = vpop.f32.mrb[0].mxu0
    %v889 = vpop.f32.mrb[0].mxu0
    %v890 = vadd.f32 0.0, %v889
    %v891 = vpop.f32.mrb[0].mxu0
    %892 = vdwg.mxu0
    %v893 = vmul.f32 %v887, %v354
    %v894 = vmul.f32 %v890, %v359
    %v895 = vpack.c.bf16 %v894, %v893
    %v896 = vld [vmem:[#allocation10] sm:$0xf]
    %v897 = vld [vmem:[#allocation10 + $0x4] sm:$0xf]
    %v898 = vld [vmem:[#allocation10 + $0x8] sm:$0xf]
    %v899 = vld [vmem:[#allocation10 + $0xc] sm:$0xf]
    %v900 = vld [vmem:[#allocation10 + $0x10] sm:$0xf]
    %v901 = vld [vmem:[#allocation10 + $0x14] sm:$0xf]
    %v902 = vld [vmem:[#allocation10 + $0x18] sm:$0xf]
    %v903 = vld [vmem:[#allocation10 + $0x1c] sm:$0xf]
    %v904 = vld [vmem:[#allocation10 + $0x20] sm:$0xf]
    %v905 = vld [vmem:[#allocation10 + $0x24] sm:$0xf]
    %v906 = vld [vmem:[#allocation10 + $0x28] sm:$0xf]
    %v907 = vld [vmem:[#allocation10 + $0x2c] sm:$0xf]
    %v908 = vld [vmem:[#allocation10 + $0x30] sm:$0xf]
    %v909 = vld [vmem:[#allocation10 + $0x34] sm:$0xf]
    %v910 = vld [vmem:[#allocation10 + $0x38] sm:$0xf]
    %v911 = vld [vmem:[#allocation10 + $0x3c] sm:$0xf]
    %v912 = vld [vmem:[#allocation11] sm:$0xf]
    %v913 = vld [vmem:[#allocation11 + $0x4] sm:$0xf]
    %v914 = vld [vmem:[#allocation11 + $0x8] sm:$0xf]
    %v915 = vld [vmem:[#allocation11 + $0xc] sm:$0xf]
    %v916 = vld [vmem:[#allocation11 + $0x10] sm:$0xf]
    %v917 = vld [vmem:[#allocation11 + $0x14] sm:$0xf]
    %v918 = vld [vmem:[#allocation11 + $0x18] sm:$0xf]
    %v919 = vld [vmem:[#allocation11 + $0x1c] sm:$0xf]
    %v920 = vld [vmem:[#allocation11 + $0x20] sm:$0xf]
    %v921 = vld [vmem:[#allocation11 + $0x24] sm:$0xf]
    %v922 = vld [vmem:[#allocation11 + $0x28] sm:$0xf]
    %v923 = vld [vmem:[#allocation11 + $0x2c] sm:$0xf]
    %v924 = vld [vmem:[#allocation11 + $0x30] sm:$0xf]
    %v925 = vld [vmem:[#allocation11 + $0x34] sm:$0xf]
    %v926 = vld [vmem:[#allocation11 + $0x38] sm:$0xf]
    %v927 = vld [vmem:[#allocation11 + $0x3c] sm:$0xf]
    %v944 = vunpack.c.l.b16 %v912
    %v945 = vunpack.c.l.b16 %v913
    %v946 = vunpack.c.l.b16 %v914
    %v947 = vunpack.c.l.b16 %v915
    %v948 = vunpack.c.l.b16 %v916
    %v949 = vunpack.c.l.b16 %v917
    %v950 = vunpack.c.l.b16 %v918
    %v951 = vunpack.c.l.b16 %v919
    %v952 = vunpack.c.l.b16 %v920
    %v953 = vunpack.c.l.b16 %v921
    %v954 = vunpack.c.l.b16 %v922
    %v955 = vunpack.c.l.b16 %v923
    %v956 = vunpack.c.l.b16 %v924
    %v957 = vunpack.c.l.b16 %v925
    %v958 = vunpack.c.l.b16 %v926
    %v959 = vunpack.c.l.b16 %v927
    %v960 = vpack.c.b16 %v945, %v944
    %v961 = vpack.c.b16 %v947, %v946
    %v962 = vpack.c.b16 %v949, %v948
    %v963 = vpack.c.b16 %v951, %v950
    %v964 = vpack.c.b16 %v953, %v952
    %v965 = vpack.c.b16 %v955, %v954
    %v966 = vpack.c.b16 %v957, %v956
    %v967 = vpack.c.b16 %v959, %v958
    %976 = vmatprep.subr.bf16.mxu0 0
    %977 = vmatpush1.bf16.msra.mxu0 %v960
    %978 = vmatprep.subr.bf16.mxu0 0
    %979 = vmatpush1.bf16.msra.mxu0 %v961
    %980 = vmatprep.subr.bf16.mxu0 0
    %981 = vmatpush1.bf16.msra.mxu0 %v962
    %982 = vmatprep.subr.bf16.mxu0 0
    %983 = vmatpush1.bf16.msra.mxu0 %v963
    %984 = vmatprep.subr.bf16.mxu0 0
    %985 = vmatpush1.bf16.msra.mxu0 %v964
    %986 = vmatprep.subr.bf16.mxu0 0
    %987 = vmatpush1.bf16.msra.mxu0 %v965
    %988 = vmatprep.subr.bf16.mxu0 0
    %989 = vmatpush1.bf16.msra.mxu0 %v966
    %990 = vmatprep.subr.bf16.mxu0 0
    %991 = vmatpush1.bf16.msra.mxu0 %v967
    %992 = vmatprep.subr.bf16.mxu0 0
    %993 = vmatpush1.bf16.msra.mxu0 0
    %994 = vmatprep.subr.bf16.mxu0 0
    %995 = vmatpush1.bf16.msra.mxu0 0
    %996 = vmatprep.subr.bf16.mxu0 0
    %997 = vmatpush1.bf16.msra.mxu0 0
    %998 = vmatprep.subr.bf16.mxu0 0
    %999 = vmatpush1.bf16.msra.mxu0 0
    %1000 = vmatprep.subr.bf16.mxu0 0
    %1001 = vmatpush1.bf16.msra.mxu0 0
    %1002 = vmatprep.subr.bf16.mxu0 0
    %1003 = vmatpush1.bf16.msra.mxu0 0
    %1004 = vmatprep.subr.bf16.mxu0 0
    %1005 = vmatpush1.bf16.msra.mxu0 0
    %1006 = vmatprep.subr.bf16.mxu0 0
    %1007 = vmatpush1.bf16.msra.mxu0 0
    %1008 = vmatprep.mubr.bf16.mxu0 0
    %1009 = vmatmul.mubr.bf16.gmra.mrb[0].mxu0 %v851
    %v1010 = vpop.f32.mrb[0].mxu0
    %v1011 = vadd.f32 0.0, %v1010
    %v1012 = vpop.f32.mrb[0].mxu0
    %v1013 = vpop.f32.mrb[0].mxu0
    %v1014 = vadd.f32 0.0, %v1013
    %v1015 = vpop.f32.mrb[0].mxu0
    %1016 = vdwg.mxu0
    %v1033 = vunpack.c.l.b16 %v896
    %v1034 = vunpack.c.l.b16 %v897
    %v1035 = vunpack.c.l.b16 %v898
    %v1036 = vunpack.c.l.b16 %v899
    %v1037 = vunpack.c.l.b16 %v900
    %v1038 = vunpack.c.l.b16 %v901
    %v1039 = vunpack.c.l.b16 %v902
    %v1040 = vunpack.c.l.b16 %v903
    %v1041 = vunpack.c.l.b16 %v904
    %v1042 = vunpack.c.l.b16 %v905
    %v1043 = vunpack.c.l.b16 %v906
    %v1044 = vunpack.c.l.b16 %v907
    %v1045 = vunpack.c.l.b16 %v908
    %v1046 = vunpack.c.l.b16 %v909
    %v1047 = vunpack.c.l.b16 %v910
    %v1048 = vunpack.c.l.b16 %v911
    %v1049 = vpack.c.b16 %v1034, %v1033
    %v1050 = vpack.c.b16 %v1036, %v1035
    %v1051 = vpack.c.b16 %v1038, %v1037
    %v1052 = vpack.c.b16 %v1040, %v1039
    %v1053 = vpack.c.b16 %v1042, %v1041
    %v1054 = vpack.c.b16 %v1044, %v1043
    %v1055 = vpack.c.b16 %v1046, %v1045
    %v1056 = vpack.c.b16 %v1048, %v1047
    %1065 = vmatprep.subr.bf16.mxu0 0
    %1066 = vmatpush1.bf16.msra.mxu0 %v1049
    %1067 = vmatprep.subr.bf16.mxu0 0
    %1068 = vmatpush1.bf16.msra.mxu0 %v1050
    %1069 = vmatprep.subr.bf16.mxu0 0
    %1070 = vmatpush1.bf16.msra.mxu0 %v1051
    %1071 = vmatprep.subr.bf16.mxu0 0
    %1072 = vmatpush1.bf16.msra.mxu0 %v1052
    %1073 = vmatprep.subr.bf16.mxu0 0
    %1074 = vmatpush1.bf16.msra.mxu0 %v1053
    %1075 = vmatprep.subr.bf16.mxu0 0
    %1076 = vmatpush1.bf16.msra.mxu0 %v1054
    %1077 = vmatprep.subr.bf16.mxu0 0
    %1078 = vmatpush1.bf16.msra.mxu0 %v1055
    %1079 = vmatprep.subr.bf16.mxu0 0
    %1080 = vmatpush1.bf16.msra.mxu0 %v1056
    %1081 = vmatprep.subr.bf16.mxu0 0
    %1082 = vmatpush1.bf16.msra.mxu0 0
    %1083 = vmatprep.subr.bf16.mxu0 0
    %1084 = vmatpush1.bf16.msra.mxu0 0
    %1085 = vmatprep.subr.bf16.mxu0 0
    %1086 = vmatpush1.bf16.msra.mxu0 0
    %1087 = vmatprep.subr.bf16.mxu0 0
    %1088 = vmatpush1.bf16.msra.mxu0 0
    %1089 = vmatprep.subr.bf16.mxu0 0
    %1090 = vmatpush1.bf16.msra.mxu0 0
    %1091 = vmatprep.subr.bf16.mxu0 0
    %1092 = vmatpush1.bf16.msra.mxu0 0
    %1093 = vmatprep.subr.bf16.mxu0 0
    %1094 = vmatpush1.bf16.msra.mxu0 0
    %1095 = vmatprep.subr.bf16.mxu0 0
    %1096 = vmatpush1.bf16.msra.mxu0 0
    %1097 = vmatprep.mubr.bf16.mxu0 0
    %1098 = vmatmul.mubr.bf16.gmra.mrb[0].mxu0 %v585
    %v1099 = vpop.f32.mrb[0].mxu0
    %v1100 = vadd.f32 %v1011, %v1099
    %v1101 = vpop.f32.mrb[0].mxu0
    %v1102 = vpop.f32.mrb[0].mxu0
    %v1103 = vadd.f32 %v1014, %v1102
    %v1104 = vpop.f32.mrb[0].mxu0
    %1105 = vdwg.mxu0
    %v1106 = vld [vmem:[#allocation13] sm:$0x1]
    %v1108 = vlaneseq
    %v1109 = vshrl.u32 %v1108, 7
    %v1110 = vsub.s32 0, %v1109
    %v1111 = vrot.slane %v1106, %v1110
    %v1113 = vadd.f32 %v1100, %v1111
    %v1114 = vadd.f32 %v1103, %v1111
    %v1115 = vpack.c.bf16 %v1114, %v1113
    %v1116 = vld [vmem:[#allocation14] sm:$0xf]
    %v1117 = vld [vmem:[#allocation14 + $0x4] sm:$0xf]
    %v1118 = vld [vmem:[#allocation14 + $0x8] sm:$0xf]
    %v1119 = vld [vmem:[#allocation14 + $0xc] sm:$0xf]
    %v1120 = vld [vmem:[#allocation14 + $0x10] sm:$0xf]
    %v1121 = vld [vmem:[#allocation14 + $0x14] sm:$0xf]
    %v1122 = vld [vmem:[#allocation14 + $0x18] sm:$0xf]
    %v1123 = vld [vmem:[#allocation14 + $0x1c] sm:$0xf]
    %v1124 = vld [vmem:[#allocation14 + $0x20] sm:$0xf]
    %v1125 = vld [vmem:[#allocation14 + $0x24] sm:$0xf]
    %v1126 = vld [vmem:[#allocation14 + $0x28] sm:$0xf]
    %v1127 = vld [vmem:[#allocation14 + $0x2c] sm:$0xf]
    %v1128 = vld [vmem:[#allocation14 + $0x30] sm:$0xf]
    %v1129 = vld [vmem:[#allocation14 + $0x34] sm:$0xf]
    %v1130 = vld [vmem:[#allocation14 + $0x38] sm:$0xf]
    %v1131 = vld [vmem:[#allocation14 + $0x3c] sm:$0xf]
    %v1132 = vld [vmem:[#allocation16] sm:$0xf]
    %v1133 = vld [vmem:[#allocation16 + $0x4] sm:$0xf]
    %v1134 = vld [vmem:[#allocation16 + $0x8] sm:$0xf]
    %v1135 = vld [vmem:[#allocation16 + $0xc] sm:$0xf]
    %v1136 = vld [vmem:[#allocation16 + $0x10] sm:$0xf]
    %v1137 = vld [vmem:[#allocation16 + $0x14] sm:$0xf]
    %v1138 = vld [vmem:[#allocation16 + $0x18] sm:$0xf]
    %v1139 = vld [vmem:[#allocation16 + $0x1c] sm:$0xf]
    %v1140 = vld [vmem:[#allocation16 + $0x20] sm:$0xf]
    %v1141 = vld [vmem:[#allocation16 + $0x24] sm:$0xf]
    %v1142 = vld [vmem:[#allocation16 + $0x28] sm:$0xf]
    %v1143 = vld [vmem:[#allocation16 + $0x2c] sm:$0xf]
    %v1144 = vld [vmem:[#allocation16 + $0x30] sm:$0xf]
    %v1145 = vld [vmem:[#allocation16 + $0x34] sm:$0xf]
    %v1146 = vld [vmem:[#allocation16 + $0x38] sm:$0xf]
    %v1147 = vld [vmem:[#allocation16 + $0x3c] sm:$0xf]
    %v1164 = vunpack.c.l.b16 %v1132
    %v1165 = vunpack.c.l.b16 %v1133
    %v1166 = vunpack.c.l.b16 %v1134
    %v1167 = vunpack.c.l.b16 %v1135
    %v1168 = vunpack.c.l.b16 %v1136
    %v1169 = vunpack.c.l.b16 %v1137
    %v1170 = vunpack.c.l.b16 %v1138
    %v1171 = vunpack.c.l.b16 %v1139
    %v1172 = vunpack.c.l.b16 %v1140
    %v1173 = vunpack.c.l.b16 %v1141
    %v1174 = vunpack.c.l.b16 %v1142
    %v1175 = vunpack.c.l.b16 %v1143
    %v1176 = vunpack.c.l.b16 %v1144
    %v1177 = vunpack.c.l.b16 %v1145
    %v1178 = vunpack.c.l.b16 %v1146
    %v1179 = vunpack.c.l.b16 %v1147
    %v1180 = vpack.c.b16 %v1165, %v1164
    %v1181 = vpack.c.b16 %v1167, %v1166
    %v1182 = vpack.c.b16 %v1169, %v1168
    %v1183 = vpack.c.b16 %v1171, %v1170
    %v1184 = vpack.c.b16 %v1173, %v1172
    %v1185 = vpack.c.b16 %v1175, %v1174
    %v1186 = vpack.c.b16 %v1177, %v1176
    %v1187 = vpack.c.b16 %v1179, %v1178
    %1196 = vmatprep.subr.bf16.mxu0 0
    %1197 = vmatpush1.bf16.msra.mxu0 %v1180
    %1198 = vmatprep.subr.bf16.mxu0 0
    %1199 = vmatpush1.bf16.msra.mxu0 %v1181
    %1200 = vmatprep.subr.bf16.mxu0 0
    %1201 = vmatpush1.bf16.msra.mxu0 %v1182
    %1202 = vmatprep.subr.bf16.mxu0 0
    %1203 = vmatpush1.bf16.msra.mxu0 %v1183
    %1204 = vmatprep.subr.bf16.mxu0 0
    %1205 = vmatpush1.bf16.msra.mxu0 %v1184
    %1206 = vmatprep.subr.bf16.mxu0 0
    %1207 = vmatpush1.bf16.msra.mxu0 %v1185
    %1208 = vmatprep.subr.bf16.mxu0 0
    %1209 = vmatpush1.bf16.msra.mxu0 %v1186
    %1210 = vmatprep.subr.bf16.mxu0 0
    %1211 = vmatpush1.bf16.msra.mxu0 %v1187
    %1212 = vmatprep.subr.bf16.mxu0 0
    %1213 = vmatpush1.bf16.msra.mxu0 0
    %1214 = vmatprep.subr.bf16.mxu0 0
    %1215 = vmatpush1.bf16.msra.mxu0 0
    %1216 = vmatprep.subr.bf16.mxu0 0
    %1217 = vmatpush1.bf16.msra.mxu0 0
    %1218 = vmatprep.subr.bf16.mxu0 0
    %1219 = vmatpush1.bf16.msra.mxu0 0
    %1220 = vmatprep.subr.bf16.mxu0 0
    %1221 = vmatpush1.bf16.msra.mxu0 0
    %1222 = vmatprep.subr.bf16.mxu0 0
    %1223 = vmatpush1.bf16.msra.mxu0 0
    %1224 = vmatprep.subr.bf16.mxu0 0
    %1225 = vmatpush1.bf16.msra.mxu0 0
    %1226 = vmatprep.subr.bf16.mxu0 0
    %1227 = vmatpush1.bf16.msra.mxu0 0
    %1228 = vmatprep.mubr.bf16.mxu0 0
    %1229 = vmatmul.mubr.bf16.gmra.mrb[0].mxu0 %v895
    %v1230 = vpop.f32.mrb[0].mxu0
    %v1231 = vadd.f32 0.0, %v1230
    %v1232 = vpop.f32.mrb[0].mxu0
    %v1233 = vpop.f32.mrb[0].mxu0
    %v1234 = vadd.f32 0.0, %v1233
    %v1235 = vpop.f32.mrb[0].mxu0
    %1236 = vdwg.mxu0
    %v1253 = vunpack.c.l.b16 %v1116
    %v1254 = vunpack.c.l.b16 %v1117
    %v1255 = vunpack.c.l.b16 %v1118
    %v1256 = vunpack.c.l.b16 %v1119
    %v1257 = vunpack.c.l.b16 %v1120
    %v1258 = vunpack.c.l.b16 %v1121
    %v1259 = vunpack.c.l.b16 %v1122
    %v1260 = vunpack.c.l.b16 %v1123
    %v1261 = vunpack.c.l.b16 %v1124
    %v1262 = vunpack.c.l.b16 %v1125
    %v1263 = vunpack.c.l.b16 %v1126
    %v1264 = vunpack.c.l.b16 %v1127
    %v1265 = vunpack.c.l.b16 %v1128
    %v1266 = vunpack.c.l.b16 %v1129
    %v1267 = vunpack.c.l.b16 %v1130
    %v1268 = vunpack.c.l.b16 %v1131
    %v1269 = vpack.c.b16 %v1254, %v1253
    %v1270 = vpack.c.b16 %v1256, %v1255
    %v1271 = vpack.c.b16 %v1258, %v1257
    %v1272 = vpack.c.b16 %v1260, %v1259
    %v1273 = vpack.c.b16 %v1262, %v1261
    %v1274 = vpack.c.b16 %v1264, %v1263
    %v1275 = vpack.c.b16 %v1266, %v1265
    %v1276 = vpack.c.b16 %v1268, %v1267
    %1285 = vmatprep.subr.bf16.mxu0 0
    %1286 = vmatpush1.bf16.msra.mxu0 %v1269
    %1287 = vmatprep.subr.bf16.mxu0 0
    %1288 = vmatpush1.bf16.msra.mxu0 %v1270
    %1289 = vmatprep.subr.bf16.mxu0 0
    %1290 = vmatpush1.bf16.msra.mxu0 %v1271
    %1291 = vmatprep.subr.bf16.mxu0 0
    %1292 = vmatpush1.bf16.msra.mxu0 %v1272
    %1293 = vmatprep.subr.bf16.mxu0 0
    %1294 = vmatpush1.bf16.msra.mxu0 %v1273
    %1295 = vmatprep.subr.bf16.mxu0 0
    %1296 = vmatpush1.bf16.msra.mxu0 %v1274
    %1297 = vmatprep.subr.bf16.mxu0 0
    %1298 = vmatpush1.bf16.msra.mxu0 %v1275
    %1299 = vmatprep.subr.bf16.mxu0 0
    %1300 = vmatpush1.bf16.msra.mxu0 %v1276
    %1301 = vmatprep.subr.bf16.mxu0 0
    %1302 = vmatpush1.bf16.msra.mxu0 0
    %1303 = vmatprep.subr.bf16.mxu0 0
    %1304 = vmatpush1.bf16.msra.mxu0 0
    %1305 = vmatprep.subr.bf16.mxu0 0
    %1306 = vmatpush1.bf16.msra.mxu0 0
    %1307 = vmatprep.subr.bf16.mxu0 0
    %1308 = vmatpush1.bf16.msra.mxu0 0
    %1309 = vmatprep.subr.bf16.mxu0 0
    %1310 = vmatpush1.bf16.msra.mxu0 0
    %1311 = vmatprep.subr.bf16.mxu0 0
    %1312 = vmatpush1.bf16.msra.mxu0 0
    %1313 = vmatprep.subr.bf16.mxu0 0
    %1314 = vmatpush1.bf16.msra.mxu0 0
    %1315 = vmatprep.subr.bf16.mxu0 0
    %1316 = vmatpush1.bf16.msra.mxu0 0
    %1317 = vmatprep.mubr.bf16.mxu0 0
    %1318 = vmatmul.mubr.bf16.gmra.mrb[0].mxu0 %v807
    %v1319 = vpop.f32.mrb[0].mxu0
    %v1320 = vadd.f32 %v1231, %v1319
    %v1321 = vpop.f32.mrb[0].mxu0
    %v1322 = vpop.f32.mrb[0].mxu0
    %v1323 = vadd.f32 %v1234, %v1322
    %v1324 = vpop.f32.mrb[0].mxu0
    %1325 = vdwg.mxu0
    %v1326 = vld [vmem:[#allocation17] sm:$0x1]
    %v1328 = vlaneseq
    %v1329 = vshrl.u32 %v1328, 7
    %v1330 = vsub.s32 0, %v1329
    %v1331 = vrot.slane %v1326, %v1330
    %v1333 = vadd.f32 %v1320, %v1331
    %v1334 = vadd.f32 %v1323, %v1331
    %v1335 = vpack.c.bf16 %v1334, %v1333
    %v1336 = vlaneseq
    %v1337 = vand.u32 %v1336, 127
    %v1338 = vld [vmem:[%s6] sm:$0xff]
    %1339 = vset.pattern.permute.xlu0 0
    %1340 = vperm.xlu0 %1339, %v1338
    %v1341 = vpop.permute.xlu0 %1340
    %vm1342 = vcmp.eq.s32.totalorder %v1337, %v1341
    %v1343 = vsel %vm1342, 1, 0
    %v1344 = vcvt.s32.f32 %v1343
    %v1345 = vpack.c.bf16 %v1344, %v1344
    %v1346 = vld [vmem:[%s7] sm:$0xff]
    %1347 = vset.pattern.permute.xlu0 0
    %1348 = vperm.xlu0 %1347, %v1346
    %v1349 = vpop.permute.xlu0 %1348
    %vm1350 = vcmp.eq.s32.totalorder %v1337, %v1349
    %v1351 = vsel %vm1350, 1, 0
    %v1352 = vcvt.s32.f32 %v1351
    %v1353 = vpack.c.bf16 %v1352, %v1352
    %v1355 = vsel %vm238, %v1345, 0
    %1357 = vmatprep.subr.bf16.mxu0 0
    %1358 = vmatpush1.bf16.msra.mxu0 %v1115
    %1359 = vmatprep.subr.bf16.mxu0 0
    %1360 = vmatpush1.bf16.msra.mxu0 0
    %1361 = vmatprep.subr.bf16.mxu0 0
    %1362 = vmatpush1.bf16.msra.mxu0 0
    %1363 = vmatprep.subr.bf16.mxu0 0
    %1364 = vmatpush1.bf16.msra.mxu0 0
    %1365 = vmatprep.subr.bf16.mxu0 0
    %1366 = vmatpush1.bf16.msra.mxu0 0
    %1367 = vmatprep.subr.bf16.mxu0 0
    %1368 = vmatpush1.bf16.msra.mxu0 0
    %1369 = vmatprep.subr.bf16.mxu0 0
    %1370 = vmatpush1.bf16.msra.mxu0 0
    %1371 = vmatprep.subr.bf16.mxu0 0
    %1372 = vmatpush1.bf16.msra.mxu0 0
    %1373 = vmatprep.subr.bf16.mxu0 0
    %1374 = vmatpush1.bf16.msra.mxu0 0
    %1375 = vmatprep.subr.bf16.mxu0 0
    %1376 = vmatpush1.bf16.msra.mxu0 0
    %1377 = vmatprep.subr.bf16.mxu0 0
    %1378 = vmatpush1.bf16.msra.mxu0 0
    %1379 = vmatprep.subr.bf16.mxu0 0
    %1380 = vmatpush1.bf16.msra.mxu0 0
    %1381 = vmatprep.subr.bf16.mxu0 0
    %1382 = vmatpush1.bf16.msra.mxu0 0
    %1383 = vmatprep.subr.bf16.mxu0 0
    %1384 = vmatpush1.bf16.msra.mxu0 0
    %1385 = vmatprep.subr.bf16.mxu0 0
    %1386 = vmatpush1.bf16.msra.mxu0 0
    %1387 = vmatprep.subr.bf16.mxu0 0
    %1388 = vmatpush1.bf16.msra.mxu0 0
    %1389 = vmatprep.mubr.bf16.mxu0 0
    %1390 = vmatmul.mubr.bf16.gmra.mrb[0].mxu0 %v1355
    %v1391 = vpop.f32.mrb[0].mxu0
    %v1392 = vadd.f32 0.0, %v1391
    %v1393 = vpop.f32.mrb[0].mxu0
    %v1394 = vpop.f32.mrb[0].mxu0
    %v1395 = vpop.f32.mrb[0].mxu0
    %1396 = vdwg.mxu0
    %v1398 = vsel %vm238, %v1353, 0
    %1400 = vmatprep.subr.bf16.mxu0 0
    %1401 = vmatpush1.bf16.msra.mxu0 %v1335
    %1402 = vmatprep.subr.bf16.mxu0 0
    %1403 = vmatpush1.bf16.msra.mxu0 0
    %1404 = vmatprep.subr.bf16.mxu0 0
    %1405 = vmatpush1.bf16.msra.mxu0 0
    %1406 = vmatprep.subr.bf16.mxu0 0
    %1407 = vmatpush1.bf16.msra.mxu0 0
    %1408 = vmatprep.subr.bf16.mxu0 0
    %1409 = vmatpush1.bf16.msra.mxu0 0
    %1410 = vmatprep.subr.bf16.mxu0 0
    %1411 = vmatpush1.bf16.msra.mxu0 0
    %1412 = vmatprep.subr.bf16.mxu0 0
    %1413 = vmatpush1.bf16.msra.mxu0 0
    %1414 = vmatprep.subr.bf16.mxu0 0
    %1415 = vmatpush1.bf16.msra.mxu0 0
    %1416 = vmatprep.subr.bf16.mxu0 0
    %1417 = vmatpush1.bf16.msra.mxu0 0
    %1418 = vmatprep.subr.bf16.mxu0 0
    %1419 = vmatpush1.bf16.msra.mxu0 0
    %1420 = vmatprep.subr.bf16.mxu0 0
    %1421 = vmatpush1.bf16.msra.mxu0 0
    %1422 = vmatprep.subr.bf16.mxu0 0
    %1423 = vmatpush1.bf16.msra.mxu0 0
    %1424 = vmatprep.subr.bf16.mxu0 0
    %1425 = vmatpush1.bf16.msra.mxu0 0
    %1426 = vmatprep.subr.bf16.mxu0 0
    %1427 = vmatpush1.bf16.msra.mxu0 0
    %1428 = vmatprep.subr.bf16.mxu0 0
    %1429 = vmatpush1.bf16.msra.mxu0 0
    %1430 = vmatprep.subr.bf16.mxu0 0
    %1431 = vmatpush1.bf16.msra.mxu0 0
    %1432 = vmatprep.mubr.bf16.mxu0 0
    %1433 = vmatmul.mubr.bf16.gmra.mrb[0].mxu0 %v1398
    %v1434 = vpop.f32.mrb[0].mxu0
    %v1435 = vadd.f32 0.0, %v1434
    %v1436 = vpop.f32.mrb[0].mxu0
    %v1437 = vpop.f32.mrb[0].mxu0
    %v1438 = vpop.f32.mrb[0].mxu0
    %1439 = vdwg.mxu0
    %v1440 = vpack.c.bf16 %v1392, %v1392
    %v1441 = vld [vmem:[#allocation19] sm:$0xf]
    %v1442 = vld [vmem:[#allocation19 + $0x4] sm:$0xf]
    %v1443 = vld [vmem:[#allocation19 + $0x8] sm:$0xf]
    %v1444 = vld [vmem:[#allocation19 + $0xc] sm:$0xf]
    %v1445 = vld [vmem:[#allocation19 + $0x10] sm:$0xf]
    %v1446 = vld [vmem:[#allocation19 + $0x14] sm:$0xf]
    %v1447 = vld [vmem:[#allocation19 + $0x18] sm:$0xf]
    %v1448 = vld [vmem:[#allocation19 + $0x1c] sm:$0xf]
    %v1449 = vld [vmem:[#allocation19 + $0x20] sm:$0xf]
    %v1450 = vld [vmem:[#allocation19 + $0x24] sm:$0xf]
    %v1451 = vld [vmem:[#allocation19 + $0x28] sm:$0xf]
    %v1452 = vld [vmem:[#allocation19 + $0x2c] sm:$0xf]
    %v1453 = vld [vmem:[#allocation19 + $0x30] sm:$0xf]
    %v1454 = vld [vmem:[#allocation19 + $0x34] sm:$0xf]
    %v1455 = vld [vmem:[#allocation19 + $0x38] sm:$0xf]
    %v1456 = vld [vmem:[#allocation19 + $0x3c] sm:$0xf]
    %v1473 = vunpack.c.l.b16 %v1441
    %v1474 = vunpack.c.l.b16 %v1442
    %v1475 = vunpack.c.l.b16 %v1443
    %v1476 = vunpack.c.l.b16 %v1444
    %v1477 = vunpack.c.l.b16 %v1445
    %v1478 = vunpack.c.l.b16 %v1446
    %v1479 = vunpack.c.l.b16 %v1447
    %v1480 = vunpack.c.l.b16 %v1448
    %v1481 = vunpack.c.l.b16 %v1449
    %v1482 = vunpack.c.l.b16 %v1450
    %v1483 = vunpack.c.l.b16 %v1451
    %v1484 = vunpack.c.l.b16 %v1452
    %v1485 = vunpack.c.l.b16 %v1453
    %v1486 = vunpack.c.l.b16 %v1454
    %v1487 = vunpack.c.l.b16 %v1455
    %v1488 = vunpack.c.l.b16 %v1456
    %v1489 = vpack.c.b16 %v1474, %v1473
    %v1490 = vpack.c.b16 %v1476, %v1475
    %v1491 = vpack.c.b16 %v1478, %v1477
    %v1492 = vpack.c.b16 %v1480, %v1479
    %v1493 = vpack.c.b16 %v1482, %v1481
    %v1494 = vpack.c.b16 %v1484, %v1483
    %v1495 = vpack.c.b16 %v1486, %v1485
    %v1496 = vpack.c.b16 %v1488, %v1487
    %1505 = vmatprep.subr.bf16.mxu0 0
    %1506 = vmatpush1.bf16.msra.mxu0 %v1489
    %1507 = vmatprep.subr.bf16.mxu0 0
    %1508 = vmatpush1.bf16.msra.mxu0 %v1490
    %1509 = vmatprep.subr.bf16.mxu0 0
    %1510 = vmatpush1.bf16.msra.mxu0 %v1491
    %1511 = vmatprep.subr.bf16.mxu0 0
    %1512 = vmatpush1.bf16.msra.mxu0 %v1492
    %1513 = vmatprep.subr.bf16.mxu0 0
    %1514 = vmatpush1.bf16.msra.mxu0 %v1493
    %1515 = vmatprep.subr.bf16.mxu0 0
    %1516 = vmatpush1.bf16.msra.mxu0 %v1494
    %1517 = vmatprep.subr.bf16.mxu0 0
    %1518 = vmatpush1.bf16.msra.mxu0 %v1495
    %1519 = vmatprep.subr.bf16.mxu0 0
    %1520 = vmatpush1.bf16.msra.mxu0 %v1496
    %1521 = vmatprep.subr.bf16.mxu0 0
    %1522 = vmatpush1.bf16.msra.mxu0 0
    %1523 = vmatprep.subr.bf16.mxu0 0
    %1524 = vmatpush1.bf16.msra.mxu0 0
    %1525 = vmatprep.subr.bf16.mxu0 0
    %1526 = vmatpush1.bf16.msra.mxu0 0
    %1527 = vmatprep.subr.bf16.mxu0 0
    %1528 = vmatpush1.bf16.msra.mxu0 0
    %1529 = vmatprep.subr.bf16.mxu0 0
    %1530 = vmatpush1.bf16.msra.mxu0 0
    %1531 = vmatprep.subr.bf16.mxu0 0
    %1532 = vmatpush1.bf16.msra.mxu0 0
    %1533 = vmatprep.subr.bf16.mxu0 0
    %1534 = vmatpush1.bf16.msra.mxu0 0
    %1535 = vmatprep.subr.bf16.mxu0 0
    %1536 = vmatpush1.bf16.msra.mxu0 0
    %1537 = vmatprep.mubr.bf16.mxu0 0
    %1538 = vmatmul.mubr.bf16.gmra.mrb[0].mxu0 %v1440
    %v1539 = vpop.f32.mrb[0].mxu0
    %v1540 = vadd.f32 0.0, %v1539
    %v1541 = vpop.f32.mrb[0].mxu0
    %v1542 = vpop.f32.mrb[0].mxu0
    %v1543 = vpop.f32.mrb[0].mxu0
    %1544 = vdwg.mxu0
    %v1545 = vmul.f32 %v1540, %v1435
    %1546 = vadd.xlane.f32.xlu0 %v1545
    %v1547 = vpop.xlane.xlu0 %1546
    %v1548 = vld [vmem:[#allocation2] sm:$0x1]
    %v1550 = vlaneseq
    %v1551 = vshrl.u32 %v1550, 7
    %v1552 = vsub.s32 0, %v1551
    %v1553 = vrot.slane %v1548, %v1552
    %v1555 = vadd.f32 %v1547, %v1553
    %vm1556 = vcmask 7168
    %1557 = vst.msk [vmem:[%s22] sm:$0xff] %vm1556, %v1555
    // Predicated region
    $region134: #{gene_panel_gnn_forward.1} parent=1 // pred_check
      _
    $region135: #{gene_panel_gnn_forward.1} parent=1 // pred_check_branch
      %1559 = sbr.rel (0) target = $region137
    $region136: #{gene_panel_gnn_forward.1} parent=1 // pred_region
      _
    $region137: #{gene_panel_gnn_forward.1} parent=1 // pred_fallthru
      _
    // Predicated region
    $region138: #{gene_panel_gnn_forward.1} parent=1 // pred_check
      _
    $region139: #{gene_panel_gnn_forward.1} parent=1 // pred_check_branch
      %1561 = sbr.rel (0) target = $region141
    $region140: #{gene_panel_gnn_forward.1} parent=1 // pred_region
      _
    $region141: #{gene_panel_gnn_forward.1} parent=1 // pred_fallthru
      _
    %1562 = vsyncpa [#allocation4], 1
    %1563 = vsyncpa [#allocation6], 1
    %1564 = vsyncpa [#allocation9], 1
    %1565 = vsyncpa [#allocation12], 1
    %1566 = vsyncpa [#allocation15], 1
    %1567 = vsyncpa [#allocation18], 1

</llo_original>
